<compile_context>
chip_gen: v7x
topology: tpu7x:2x2x1
jax: 0.10.0
libtpu: 0.0.40
codegen_flags: <defaults>
</compile_context>

<pallas_src>
import functools

import jax
import jax.numpy as jnp
from jax.experimental import pallas as pl
from jax.experimental.pallas import tpu as pltpu


def mha_kernel(x_ref, wq_ref, wkv_ref, wo_ref, gamma_ref, beta_ref, o_ref,
               *, n_head, d_head, eps):
    H, Dh = n_head, d_head
    x = x_ref[...]                                   # (T, D) f32 slab, one batch
    xb = x.astype(jnp.bfloat16)

    # Projections: weights already transposed to (D, H*Dh) / (D, 2*H*Dh), scale
    # folded into W_q.  bf16 operands, f32 accumulation on the MXU.
    q = jnp.dot(xb, wq_ref[...], preferred_element_type=jnp.float32)    # (T, H*Dh)
    kv = jnp.dot(xb, wkv_ref[...], preferred_element_type=jnp.float32)  # (T, 2*H*Dh)
    k = kv[:, : H * Dh]
    v = kv[:, H * Dh:]

    # Head-batched (H, T, Dh) layout: static slices stacked on a new leading
    # axis (no lane concat of results later).
    qb = q.astype(jnp.bfloat16)
    kb = k.astype(jnp.bfloat16)
    vb = v.astype(jnp.bfloat16)
    q3 = jnp.stack([qb[:, h * Dh:(h + 1) * Dh] for h in range(H)], axis=0)
    k3 = jnp.stack([kb[:, h * Dh:(h + 1) * Dh] for h in range(H)], axis=0)
    v3 = jnp.stack([vb[:, h * Dh:(h + 1) * Dh] for h in range(H)], axis=0)

    # All heads' scores back-to-back on the MXU (q already carries the scale).
    s = jnp.einsum('hqd,hkd->hqk', q3, k3,
                   preferred_element_type=jnp.float32)                  # (H, T, T)
    m = jnp.max(s, axis=-1, keepdims=True)
    p = jnp.exp(s - m)                                                   # unnormalized
    l = jnp.sum(p, axis=-1, keepdims=True)                               # (H, T, 1)

    ctx = jnp.einsum('hqk,hkd->hqd', p.astype(jnp.bfloat16), v3,
                     preferred_element_type=jnp.float32)                 # (H, T, Dh)
    # Deferred softmax normalization: cheap (T, Dh) multiply, EUP reciprocal.
    ctx = ctx * pl.reciprocal(l, approx=True)

    # Output projection, head-batched against W_o^T reshaped to (H, Dh, D),
    # then summed over heads (replaces concat + one wide matmul).
    out_h = jnp.einsum('hqd,hde->hqe', ctx.astype(jnp.bfloat16), wo_ref[...],
                       preferred_element_type=jnp.float32)               # (H, T, D)
    attn_out = jnp.sum(out_h, axis=0)                                    # (T, D)

    # Residual + post-LayerNorm, single-pass statistics (E[y], E[y^2]).
    y = x + attn_out
    inv_d = 1.0 / y.shape[-1]
    mean = jnp.sum(y, axis=-1, keepdims=True) * inv_d
    mean_sq = jnp.sum(y * y, axis=-1, keepdims=True) * inv_d
    var = mean_sq - mean * mean
    yn = (y - mean) * jax.lax.rsqrt(var + eps)
    o_ref[...] = yn * gamma_ref[...] + beta_ref[...]


def multi_head_attn(h, wq, wkv, wo, gamma, beta, *, n_head, d_head, eps=1e-5):
    """h: (T, B, D) float32.  Returns (T, B, D).  Post-LN, no mask/mems."""
    T, B, D = h.shape
    H, Dh = n_head, d_head
    assert D % 128 == 0 or B == 1, "lane blocking needs d_model % 128 == 0"
    scale = 1.0 / (d_head ** 0.5)

    # One-time weight prep outside the kernel: transpose so the kernel never
    # does W.T, fold the softmax scale into W_q, expose W_o per head, cast bf16.
    wq_t = (wq.T * scale).astype(jnp.bfloat16)           # (D, H*Dh)
    wkv_t = wkv.T.astype(jnp.bfloat16)                   # (D, 2*H*Dh)
    wo_h = wo.T.reshape(H, Dh, D).astype(jnp.bfloat16)   # (H, Dh, D)
    gamma2 = gamma.reshape(1, D).astype(jnp.float32)
    beta2 = beta.reshape(1, D).astype(jnp.float32)

    # Free reshape (no HBM transpose pass): batch b lives at lanes [b*D,(b+1)*D).
    x2 = h.reshape(T, B * D)

    kernel = functools.partial(mha_kernel, n_head=H, d_head=Dh, eps=eps)

    out2 = pl.pallas_call(
        kernel,
        out_shape=jax.ShapeDtypeStruct((T, B * D), jnp.float32),
        grid_spec=pltpu.PrefetchScalarGridSpec(
            num_scalar_prefetch=0,
            grid=(B,),
            in_specs=[
                pl.BlockSpec((T, D), lambda b: (0, b)),             # x slab for batch b
                pl.BlockSpec((D, H * Dh), lambda b: (0, 0)),        # W_q^T (scaled, bf16)
                pl.BlockSpec((D, 2 * H * Dh), lambda b: (0, 0)),    # W_kv^T (bf16)
                pl.BlockSpec((H, Dh, D), lambda b: (0, 0, 0)),      # W_o^T per head (bf16)
                pl.BlockSpec((1, D), lambda b: (0, 0)),             # LN gamma
                pl.BlockSpec((1, D), lambda b: (0, 0)),             # LN beta
            ],
            out_specs=pl.BlockSpec((T, D), lambda b: (0, b)),
        ),
        compiler_params=pltpu.CompilerParams(
            dimension_semantics=("parallel",)),
    )(x2, wq_t, wkv_t, wo_h, gamma2, beta2)

    return out2.reshape(T, B, D)


def reference(h, wq, wkv, wo, gamma, beta, *, n_head, d_head, eps=1e-5):
    """Pure-JAX f32 mirror of the PyTorch forward (post-lnorm, no mask/mems)."""
    T, B, D = h.shape
    scale = 1.0 / (d_head ** 0.5)
    q = jnp.einsum('tbd,ed->tbe', h, wq).reshape(T, B, n_head, d_head)
    kv = jnp.einsum('tbd,ed->tbe', h, wkv)
    k = kv[..., : n_head * d_head].reshape(T, B, n_head, d_head)
    v = kv[..., n_head * d_head:].reshape(T, B, n_head, d_head)
    score = jnp.einsum('ibnd,jbnd->ijbn', q, k) * scale
    prob = jax.nn.softmax(score, axis=1)
    vec = jnp.einsum('ijbn,jbnd->ibnd', prob, v).reshape(T, B, n_head * d_head)
    out = jnp.einsum('tbe,de->tbd', vec, wo)
    y = h + out
    mean = y.mean(-1, keepdims=True)
    var = ((y - mean) ** 2).mean(-1, keepdims=True)
    return (y - mean) / jnp.sqrt(var + eps) * gamma + beta


if __name__ == "__main__":
    # Small shapes consistent with the module (d_model = n_head * d_head).
    T, B = 32, 2                 # seq_len, batch
    n_head, d_head = 4, 32
    d_model = n_head * d_head    # 128

    key = jax.random.PRNGKey(0)
    k_h, k_q, k_kv, k_o, k_g, k_b = jax.random.split(key, 6)

    h = jax.random.normal(k_h, (T, B, d_model), dtype=jnp.float32)
    # nn.Linear weights: (out_features, in_features), no bias.
    wq = 0.02 * jax.random.normal(k_q, (n_head * d_head, d_model), dtype=jnp.float32)
    wkv = 0.02 * jax.random.normal(k_kv, (2 * n_head * d_head, d_model), dtype=jnp.float32)
    wo = 0.02 * jax.random.normal(k_o, (d_model, n_head * d_head), dtype=jnp.float32)
    # nn.LayerNorm params (deterministic, non-trivial).
    gamma = 1.0 + 0.1 * jax.random.normal(k_g, (d_model,), dtype=jnp.float32)
    beta = 0.1 * jax.random.normal(k_b, (d_model,), dtype=jnp.float32)

    out = multi_head_attn(h, wq, wkv, wo, gamma, beta,
                          n_head=n_head, d_head=d_head)
    out = jax.block_until_ready(out)

    ref = reference(h, wq, wkv, wo, gamma, beta, n_head=n_head, d_head=d_head)
    assert out.shape == (T, B, d_model)
    # bf16 MXU operands + approx reciprocal => looser tolerance than pure f32.
    assert jnp.allclose(out, ref, atol=2e-2, rtol=2e-2), "mismatch vs JAX reference"

    print("KERNEL_OK")
</pallas_src>

<mosaic_0001>
module attributes {stable_mosaic.version = 11 : i64} {
  func.func @mha_kernel(%arg0: i32, %arg1: memref<32x128xf32, #tpu.memory_space<vmem>>, %arg2: memref<128x128xbf16, #tpu.memory_space<vmem>>, %arg3: memref<128x256xbf16, #tpu.memory_space<vmem>>, %arg4: memref<4x32x128xbf16, #tpu.memory_space<vmem>>, %arg5: memref<1x128xf32, #tpu.memory_space<vmem>>, %arg6: memref<1x128xf32, #tpu.memory_space<vmem>>, %arg7: memref<32x128xf32, #tpu.memory_space<vmem>>) attributes {dimension_semantics = [#tpu.dimension_semantics<parallel>], iteration_bounds = array<i64: 2>, scalar_prefetch = 0 : i64, scratch_operands = 0 : i64, tpu.core_type = #tpu.core_type<tc>, window_params = [{transform_indices = @transform_0, window_bounds = array<i64: 32, 128>}, {pipeline_mode = #tpu.pipeline_mode<synchronous>, transform_indices = @transform_1, window_bounds = array<i64: 128, 128>}, {pipeline_mode = #tpu.pipeline_mode<synchronous>, transform_indices = @transform_2, window_bounds = array<i64: 128, 256>}, {pipeline_mode = #tpu.pipeline_mode<synchronous>, transform_indices = @transform_3, window_bounds = array<i64: 4, 32, 128>}, {pipeline_mode = #tpu.pipeline_mode<synchronous>, transform_indices = @transform_4, window_bounds = array<i64: 1, 128>}, {pipeline_mode = #tpu.pipeline_mode<synchronous>, transform_indices = @transform_5, window_bounds = array<i64: 1, 128>}, {transform_indices = @transform_6, window_bounds = array<i64: 32, 128>}]} {
    %c0 = arith.constant 0 : index
    %c0_0 = arith.constant 0 : index
    %0 = vector.load %arg1[%c0, %c0_0] : memref<32x128xf32, #tpu.memory_space<vmem>>, vector<32x128xf32>
    %1 = arith.truncf %0 : vector<32x128xf32> to vector<32x128xbf16>
    %c0_1 = arith.constant 0 : index
    %c0_2 = arith.constant 0 : index
    %2 = vector.load %arg2[%c0_1, %c0_2] : memref<128x128xbf16, #tpu.memory_space<vmem>>, vector<128x128xbf16>
    %cst = arith.constant dense<0.000000e+00> : vector<32x128xf32>
    %3 = tpu.matmul %1, %2, %cst {dimension_numbers = #tpu.dot_dimension_numbers<[1], [0], [0], [1], [0, 0, 1, 1], [], []>} : vector<32x128xbf16>, vector<128x128xbf16>, vector<32x128xf32> -> vector<32x128xf32>
    %c0_3 = arith.constant 0 : index
    %c0_4 = arith.constant 0 : index
    %4 = vector.load %arg3[%c0_3, %c0_4] : memref<128x256xbf16, #tpu.memory_space<vmem>>, vector<128x256xbf16>
    %cst_5 = arith.constant dense<0.000000e+00> : vector<32x256xf32>
    %5 = tpu.matmul %1, %4, %cst_5 {dimension_numbers = #tpu.dot_dimension_numbers<[1], [0], [0], [1], [0, 0, 1, 1], [], []>} : vector<32x128xbf16>, vector<128x256xbf16>, vector<32x256xf32> -> vector<32x256xf32>
    %6 = vector.extract_strided_slice %5 {offsets = [0, 0], sizes = [32, 128], strides = [1, 1]} : vector<32x256xf32> to vector<32x128xf32>
    %7 = vector.extract_strided_slice %5 {offsets = [0, 128], sizes = [32, 128], strides = [1, 1]} : vector<32x256xf32> to vector<32x128xf32>
    %8 = arith.truncf %3 : vector<32x128xf32> to vector<32x128xbf16>
    %9 = arith.truncf %6 : vector<32x128xf32> to vector<32x128xbf16>
    %10 = arith.truncf %7 : vector<32x128xf32> to vector<32x128xbf16>
    %11 = vector.extract_strided_slice %8 {offsets = [0, 0], sizes = [32, 32], strides = [1, 1]} : vector<32x128xbf16> to vector<32x32xbf16>
    %12 = vector.extract_strided_slice %8 {offsets = [0, 32], sizes = [32, 32], strides = [1, 1]} : vector<32x128xbf16> to vector<32x32xbf16>
    %13 = vector.extract_strided_slice %8 {offsets = [0, 64], sizes = [32, 32], strides = [1, 1]} : vector<32x128xbf16> to vector<32x32xbf16>
    %14 = vector.extract_strided_slice %8 {offsets = [0, 96], sizes = [32, 32], strides = [1, 1]} : vector<32x128xbf16> to vector<32x32xbf16>
    %15 = vector.shape_cast %11 : vector<32x32xbf16> to vector<1x32x32xbf16>
    %16 = vector.shape_cast %12 : vector<32x32xbf16> to vector<1x32x32xbf16>
    %17 = vector.shape_cast %13 : vector<32x32xbf16> to vector<1x32x32xbf16>
    %18 = vector.shape_cast %14 : vector<32x32xbf16> to vector<1x32x32xbf16>
    %19 = tpu.concatenate %15, %16, %17, %18 in 0 : vector<1x32x32xbf16>, vector<1x32x32xbf16>, vector<1x32x32xbf16>, vector<1x32x32xbf16> -> vector<4x32x32xbf16>
    %20 = vector.extract_strided_slice %9 {offsets = [0, 0], sizes = [32, 32], strides = [1, 1]} : vector<32x128xbf16> to vector<32x32xbf16>
    %21 = vector.extract_strided_slice %9 {offsets = [0, 32], sizes = [32, 32], strides = [1, 1]} : vector<32x128xbf16> to vector<32x32xbf16>
    %22 = vector.extract_strided_slice %9 {offsets = [0, 64], sizes = [32, 32], strides = [1, 1]} : vector<32x128xbf16> to vector<32x32xbf16>
    %23 = vector.extract_strided_slice %9 {offsets = [0, 96], sizes = [32, 32], strides = [1, 1]} : vector<32x128xbf16> to vector<32x32xbf16>
    %24 = vector.shape_cast %20 : vector<32x32xbf16> to vector<1x32x32xbf16>
    %25 = vector.shape_cast %21 : vector<32x32xbf16> to vector<1x32x32xbf16>
    %26 = vector.shape_cast %22 : vector<32x32xbf16> to vector<1x32x32xbf16>
    %27 = vector.shape_cast %23 : vector<32x32xbf16> to vector<1x32x32xbf16>
    %28 = tpu.concatenate %24, %25, %26, %27 in 0 : vector<1x32x32xbf16>, vector<1x32x32xbf16>, vector<1x32x32xbf16>, vector<1x32x32xbf16> -> vector<4x32x32xbf16>
    %29 = vector.extract_strided_slice %10 {offsets = [0, 0], sizes = [32, 32], strides = [1, 1]} : vector<32x128xbf16> to vector<32x32xbf16>
    %30 = vector.extract_strided_slice %10 {offsets = [0, 32], sizes = [32, 32], strides = [1, 1]} : vector<32x128xbf16> to vector<32x32xbf16>
    %31 = vector.extract_strided_slice %10 {offsets = [0, 64], sizes = [32, 32], strides = [1, 1]} : vector<32x128xbf16> to vector<32x32xbf16>
    %32 = vector.extract_strided_slice %10 {offsets = [0, 96], sizes = [32, 32], strides = [1, 1]} : vector<32x128xbf16> to vector<32x32xbf16>
    %33 = vector.shape_cast %29 : vector<32x32xbf16> to vector<1x32x32xbf16>
    %34 = vector.shape_cast %30 : vector<32x32xbf16> to vector<1x32x32xbf16>
    %35 = vector.shape_cast %31 : vector<32x32xbf16> to vector<1x32x32xbf16>
    %36 = vector.shape_cast %32 : vector<32x32xbf16> to vector<1x32x32xbf16>
    %37 = tpu.concatenate %33, %34, %35, %36 in 0 : vector<1x32x32xbf16>, vector<1x32x32xbf16>, vector<1x32x32xbf16>, vector<1x32x32xbf16> -> vector<4x32x32xbf16>
    "tpu.trace_start"() <{level = 10 : i32, message = "hqd,hkd->hqk"}> : () -> ()
    %cst_6 = arith.constant dense<0.000000e+00> : vector<4x32x32xf32>
    %38 = tpu.matmul %19, %28, %cst_6 {dimension_numbers = #tpu.dot_dimension_numbers<[2], [2], [1], [1], [0, 0, 0, 1, 1, 1], [0], [0]>} : vector<4x32x32xbf16>, vector<4x32x32xbf16>, vector<4x32x32xf32> -> vector<4x32x32xf32>
    "tpu.trace_stop"() : () -> ()
    %cst_7 = arith.constant dense<0xFF800000> : vector<4x32xf32>
    %39 = vector.multi_reduction <maximumf>, %38, %cst_7 [2] : vector<4x32x32xf32> to vector<4x32xf32>
    %40 = vector.shape_cast %39 : vector<4x32xf32> to vector<4x32x1xf32>
    %41 = vector.broadcast %40 : vector<4x32x1xf32> to vector<4x32x32xf32>
    %42 = arith.subf %38, %41 : vector<4x32x32xf32>
    %43 = math.exp %42 : vector<4x32x32xf32>
    %cst_8 = arith.constant dense<0.000000e+00> : vector<4x32xf32>
    %44 = vector.multi_reduction <add>, %43, %cst_8 [2] : vector<4x32x32xf32> to vector<4x32xf32>
    %45 = vector.shape_cast %44 : vector<4x32xf32> to vector<4x32x1xf32>
    %46 = arith.truncf %43 : vector<4x32x32xf32> to vector<4x32x32xbf16>
    "tpu.trace_start"() <{level = 10 : i32, message = "hqk,hkd->hqd"}> : () -> ()
    %cst_9 = arith.constant dense<0.000000e+00> : vector<4x32x32xf32>
    %47 = tpu.matmul %46, %37, %cst_9 {dimension_numbers = #tpu.dot_dimension_numbers<[2], [1], [1], [2], [0, 0, 0, 1, 1, 2], [0], [0]>} : vector<4x32x32xbf16>, vector<4x32x32xbf16>, vector<4x32x32xf32> -> vector<4x32x32xf32>
    "tpu.trace_stop"() : () -> ()
    %48 = tpu.reciprocal %45 {approx = true} : vector<4x32x1xf32> -> vector<4x32x1xf32>
    %49 = vector.broadcast %48 : vector<4x32x1xf32> to vector<4x32x32xf32>
    %50 = arith.mulf %47, %49 : vector<4x32x32xf32>
    %51 = arith.truncf %50 : vector<4x32x32xf32> to vector<4x32x32xbf16>
    %c0_10 = arith.constant 0 : index
    %c0_11 = arith.constant 0 : index
    %c0_12 = arith.constant 0 : index
    %52 = vector.load %arg4[%c0_10, %c0_11, %c0_12] : memref<4x32x128xbf16, #tpu.memory_space<vmem>>, vector<4x32x128xbf16>
    "tpu.trace_start"() <{level = 10 : i32, message = "hqd,hde->hqe"}> : () -> ()
    %cst_13 = arith.constant dense<0.000000e+00> : vector<4x32x128xf32>
    %53 = tpu.matmul %51, %52, %cst_13 {dimension_numbers = #tpu.dot_dimension_numbers<[2], [1], [1], [2], [0, 0, 0, 1, 1, 2], [0], [0]>} : vector<4x32x32xbf16>, vector<4x32x128xbf16>, vector<4x32x128xf32> -> vector<4x32x128xf32>
    "tpu.trace_stop"() : () -> ()
    %cst_14 = arith.constant dense<0.000000e+00> : vector<32x128xf32>
    %54 = vector.multi_reduction <add>, %53, %cst_14 [0] : vector<4x32x128xf32> to vector<32x128xf32>
    %55 = arith.addf %0, %54 : vector<32x128xf32>
    %cst_15 = arith.constant dense<0.000000e+00> : vector<32xf32>
    %56 = vector.multi_reduction <add>, %55, %cst_15 [1] : vector<32x128xf32> to vector<32xf32>
    %57 = vector.shape_cast %56 : vector<32xf32> to vector<32x1xf32>
    %cst_16 = arith.constant 7.812500e-03 : f32
    %58 = vector.broadcast %cst_16 : f32 to vector<32x1xf32>
    %59 = arith.mulf %57, %58 : vector<32x1xf32>
    %60 = arith.mulf %55, %55 : vector<32x128xf32>
    %cst_17 = arith.constant dense<0.000000e+00> : vector<32xf32>
    %61 = vector.multi_reduction <add>, %60, %cst_17 [1] : vector<32x128xf32> to vector<32xf32>
    %62 = vector.shape_cast %61 : vector<32xf32> to vector<32x1xf32>
    %cst_18 = arith.constant 7.812500e-03 : f32
    %63 = vector.broadcast %cst_18 : f32 to vector<32x1xf32>
    %64 = arith.mulf %62, %63 : vector<32x1xf32>
    %65 = arith.mulf %59, %59 : vector<32x1xf32>
    %66 = arith.subf %64, %65 : vector<32x1xf32>
    %67 = vector.broadcast %59 : vector<32x1xf32> to vector<32x128xf32>
    %68 = arith.subf %55, %67 : vector<32x128xf32>
    %cst_19 = arith.constant 9.99999974E-6 : f32
    %69 = vector.broadcast %cst_19 : f32 to vector<32x1xf32>
    %70 = arith.addf %66, %69 : vector<32x1xf32>
    %71 = math.rsqrt %70 : vector<32x1xf32>
    %72 = vector.broadcast %71 : vector<32x1xf32> to vector<32x128xf32>
    %73 = arith.mulf %68, %72 : vector<32x128xf32>
    %c0_20 = arith.constant 0 : index
    %c0_21 = arith.constant 0 : index
    %74 = vector.load %arg5[%c0_20, %c0_21] : memref<1x128xf32, #tpu.memory_space<vmem>>, vector<1x128xf32>
    %75 = vector.broadcast %74 : vector<1x128xf32> to vector<32x128xf32>
    %76 = arith.mulf %73, %75 : vector<32x128xf32>
    %c0_22 = arith.constant 0 : index
    %c0_23 = arith.constant 0 : index
    %77 = vector.load %arg6[%c0_22, %c0_23] : memref<1x128xf32, #tpu.memory_space<vmem>>, vector<1x128xf32>
    %78 = vector.broadcast %77 : vector<1x128xf32> to vector<32x128xf32>
    %79 = arith.addf %76, %78 : vector<32x128xf32>
    %c0_24 = arith.constant 0 : index
    %c0_25 = arith.constant 0 : index
    %80 = vector.load %arg7[%c0_24, %c0_25] : memref<32x128xf32, #tpu.memory_space<vmem>>, vector<32x128xf32>
    tpu.vector_store %arg7[%c0_24, %c0_25], %79 {strides = array<i32>} : memref<32x128xf32, #tpu.memory_space<vmem>>, vector<32x128xf32>,
    return
  }
  func.func @transform_0(%arg0: i32) -> (i32, i32) {
    %c0_i32 = arith.constant 0 : i32
    %c0_i32_0 = arith.constant 0 : i32
    return %c0_i32, %arg0 : i32, i32
  }
  func.func @transform_1(%arg0: i32) -> (i32, i32) {
    %c0_i32 = arith.constant 0 : i32
    %c0_i32_0 = arith.constant 0 : i32
    %c0_i32_1 = arith.constant 0 : i32
    return %c0_i32, %c0_i32_0 : i32, i32
  }
  func.func @transform_2(%arg0: i32) -> (i32, i32) {
    %c0_i32 = arith.constant 0 : i32
    %c0_i32_0 = arith.constant 0 : i32
    %c0_i32_1 = arith.constant 0 : i32
    return %c0_i32, %c0_i32_0 : i32, i32
  }
  func.func @transform_3(%arg0: i32) -> (i32, i32, i32) {
    %c0_i32 = arith.constant 0 : i32
    %c0_i32_0 = arith.constant 0 : i32
    %c0_i32_1 = arith.constant 0 : i32
    %c0_i32_2 = arith.constant 0 : i32
    return %c0_i32, %c0_i32_0, %c0_i32_1 : i32, i32, i32
  }
  func.func @transform_4(%arg0: i32) -> (i32, i32) {
    %c0_i32 = arith.constant 0 : i32
    %c0_i32_0 = arith.constant 0 : i32
    %c0_i32_1 = arith.constant 0 : i32
    return %c0_i32, %c0_i32_0 : i32, i32
  }
  func.func @transform_5(%arg0: i32) -> (i32, i32) {
    %c0_i32 = arith.constant 0 : i32
    %c0_i32_0 = arith.constant 0 : i32
    %c0_i32_1 = arith.constant 0 : i32
    return %c0_i32, %c0_i32_0 : i32, i32
  }
  func.func @transform_6(%arg0: i32) -> (i32, i32) {
    %c0_i32 = arith.constant 0 : i32
    %c0_i32_0 = arith.constant 0 : i32
    return %c0_i32, %arg0 : i32, i32
  }
}

</mosaic_0001>

<llo_original>
// kernel: tpu_custom_call.1
$region0: #{tpu_custom_call.1}
  #allocation0 [shape = 'u32[]', space=smem, size = 0x4, offset = 0x4, fixed_abs, tag = 'smem constant byte address 0x4 - core index']
  #allocation1 [shape = 'u32[144,128]{1,0:T(1,128)}', space=vmem, size = 0x12000, scoped, tag = 'internal scratch']
  %s0 = inlined_call_operand.hbm [shape: f32[32,256], index: 0, kind: input, shape index: {}]
  %s1 = inlined_call_operand.hbm [shape: bf16[128,128], index: 1, kind: input, shape index: {}]
  %s2 = inlined_call_operand.hbm [shape: bf16[128,256], index: 2, kind: input, shape index: {}]
  %s3 = inlined_call_operand.hbm [shape: bf16[4,32,128], index: 3, kind: input, shape index: {}]
  %s4 = inlined_call_operand.vmem [shape: f32[1,128], index: 4, kind: input, shape index: {}]
  %s5 = inlined_call_operand.vmem [shape: f32[1,128], index: 5, kind: input, shape index: {}]
  %s6 = inlined_call_operand.hbm [shape: f32[32,256], index: 6, kind: output, shape index: {}]
  %s7 = sld [smem:[#allocation0]]
  $region73: #{tpu_custom_call.1} parent=0
    _
  %s9 = ssub.s32 1, %s7
  %s10 = scalar_select 0, %s9, %s7
  $region1: #{tpu_custom_call.1} parent=0
    #allocation2 [shape = 'u8[32768]{0}', space=vmem, size = 0x8000, scoped, tag = 'input window, operand 0']
    #allocation3 [shape = 's32[2]{0}', space=sflag, size = 0x8, scoped, tag = 'scoped memory for tpu_custom_call.1']
    #allocation4 [shape = 's32[2]{0}', space=sflag, size = 0x8, scoped, tag = 'scoped memory for tpu_custom_call.1']
    #allocation5 [shape = 'u8[32768]{0}', space=vmem, size = 0x8000, scoped, tag = 'input window, operand 1, single buffered']
    #allocation6 [shape = 's32[1]{0}', space=sflag, size = 0x4, scoped, tag = 'scoped memory for tpu_custom_call.1']
    #allocation7 [shape = 'u8[65536]{0}', space=vmem, size = 0x10000, scoped, tag = 'input window, operand 2, single buffered']
    #allocation8 [shape = 'u8[32768]{0}', space=vmem, size = 0x8000, scoped, tag = 'input window, operand 3, single buffered']
    #allocation9 [shape = 's32[1]{0}', space=sflag, size = 0x4, scoped, tag = 'scoped memory for tpu_custom_call.1']
    #allocation10 [shape = 'u8[32768]{0}', space=vmem, size = 0x8000, scoped, tag = 'output window, operand 0']
    %11 = vsyncpa [#allocation3], 0
    %s12 = scalar_lea.sflag [#allocation3], 1
    %13 = vsyncpa %s12, 0
    %14 = vsyncpa [#allocation6], 0
    %15 = vsyncpa [#allocation9], 0
    %16 = vsyncpa [#allocation4], 0
    %s17 = scalar_lea.sflag [#allocation4], 1
    %18 = vsyncpa %s17, 0
    loop: start=0, step=1, limit=4
    $region2: #{tpu_custom_call.1} parent=1 // loop_pre_header
      _
    $region3: #{tpu_custom_call.1} parent=1 // loop_header
      %s20 = sphi 0, %s24
      %p21 = scmp.ge.s32.totalorder %s20, 4
      %s30 = sphi 0, %s32
      %s33 = sphi 0, %s30
      %s34 = sphi 0, %s33
      %s50 = sphi 0, %s34
      %s54 = sphi 0, %s54
      %s56 = sphi 0, %s54
      %s57 = sphi 0, %s56
      %s71 = sphi 0, %s57
      %s75 = sphi 0, %s75
      %s77 = sphi 0, %s75
      %s78 = sphi 0, %s77
      %s92 = sphi 0, %s78
      %s96 = sphi 0, %s96
      %s98 = sphi 0, %s96
      %s99 = sphi 0, %s98
      %s113 = sphi 0, %s99
      %s117 = sphi 0, %s117
      %s119 = sphi 0, %s117
      %s120 = sphi 0, %s119
      %s134 = sphi 0, %s120
      %s138 = sphi 0, %s138
      %s140 = sphi 0, %s138
      %s141 = sphi 0, %s140
      %s155 = sphi 0, %s141
      %s161 = sphi 0, %s163
      %s164 = sphi 0, %s161
      %s165 = sphi 0, %s164
      %s181 = sphi 0, %s165
    $region4: #{tpu_custom_call.1} parent=1 // loop_header_branch
      %23 = sbr.rel (%p21) target = $region8
    $region5: #{tpu_custom_call.1} parent=1 // loop_body
      %s25 = ssub.s32 %s20, 1
      %s26 = ssub.s32 %s20, 2
      %s27 = sadd.s32 %s20, 1
      %s28 = ssub.s32 %s20, %s27
      %p29 = scmp.eq.s32.totalorder %s28, 0
      %s31 = sadd.s32 %s30, 1
      %s32 = scalar_select %p29, %s30, %s31
      %p35 = pneg %p29
      %p36 = scmp.eq.s32.totalorder %s20, 1
      %p37 = por %p35, %p36
      %p38 = scmp.ne.s32.totalorder %s30, %s33
      %p39 = scmp.eq.s32.totalorder %s20, 0
      %p40 = por %p38, %p39
      %p41 = scmp.ne.s32.totalorder %s30, %s33
      %p42 = scmp.eq.s32.totalorder %s25, 1
      %p43 = por %p41, %p42
      %p44 = scmp.ne.s32.totalorder %s33, %s34
      %p45 = scmp.eq.s32.totalorder %s25, 0
      %p46 = por %p44, %p45
      %p47 = scmp.ne.s32.totalorder %s33, %s34
      %p48 = scmp.eq.s32.totalorder %s26, 1
      %p49 = por %p47, %p48
      %p51 = scmp.ne.s32.totalorder %s34, %s50
      %p52 = scmp.eq.s32.totalorder %s26, 0
      %p53 = por %p51, %p52
      %s55 = sadd.s32 %s54, 1
      %p58 = scmp.eq.s32.totalorder %s20, 1
      %p59 = scmp.ne.s32.totalorder %s54, %s56
      %p60 = scmp.eq.s32.totalorder %s20, 0
      %p61 = por %p59, %p60
      %p62 = scmp.ne.s32.totalorder %s54, %s56
      %p63 = scmp.eq.s32.totalorder %s25, 1
      %p64 = por %p62, %p63
      %p65 = scmp.ne.s32.totalorder %s56, %s57
      %p66 = scmp.eq.s32.totalorder %s25, 0
      %p67 = por %p65, %p66
      %p68 = scmp.ne.s32.totalorder %s56, %s57
      %p69 = scmp.eq.s32.totalorder %s26, 1
      %p70 = por %p68, %p69
      %p72 = scmp.ne.s32.totalorder %s57, %s71
      %p73 = scmp.eq.s32.totalorder %s26, 0
      %p74 = por %p72, %p73
      %s76 = sadd.s32 %s75, 1
      %p79 = scmp.eq.s32.totalorder %s20, 1
      %p80 = scmp.ne.s32.totalorder %s75, %s77
      %p81 = scmp.eq.s32.totalorder %s20, 0
      %p82 = por %p80, %p81
      %p83 = scmp.ne.s32.totalorder %s75, %s77
      %p84 = scmp.eq.s32.totalorder %s25, 1
      %p85 = por %p83, %p84
      %p86 = scmp.ne.s32.totalorder %s77, %s78
      %p87 = scmp.eq.s32.totalorder %s25, 0
      %p88 = por %p86, %p87
      %p89 = scmp.ne.s32.totalorder %s77, %s78
      %p90 = scmp.eq.s32.totalorder %s26, 1
      %p91 = por %p89, %p90
      %p93 = scmp.ne.s32.totalorder %s78, %s92
      %p94 = scmp.eq.s32.totalorder %s26, 0
      %p95 = por %p93, %p94
      %s97 = sadd.s32 %s96, 1
      %p100 = scmp.eq.s32.totalorder %s20, 1
      %p101 = scmp.ne.s32.totalorder %s96, %s98
      %p102 = scmp.eq.s32.totalorder %s20, 0
      %p103 = por %p101, %p102
      %p104 = scmp.ne.s32.totalorder %s96, %s98
      %p105 = scmp.eq.s32.totalorder %s25, 1
      %p106 = por %p104, %p105
      %p107 = scmp.ne.s32.totalorder %s98, %s99
      %p108 = scmp.eq.s32.totalorder %s25, 0
      %p109 = por %p107, %p108
      %p110 = scmp.ne.s32.totalorder %s98, %s99
      %p111 = scmp.eq.s32.totalorder %s26, 1
      %p112 = por %p110, %p111
      %p114 = scmp.ne.s32.totalorder %s99, %s113
      %p115 = scmp.eq.s32.totalorder %s26, 0
      %p116 = por %p114, %p115
      %s118 = sadd.s32 %s117, 1
      %p121 = scmp.eq.s32.totalorder %s20, 1
      %p122 = scmp.ne.s32.totalorder %s117, %s119
      %p123 = scmp.eq.s32.totalorder %s20, 0
      %p124 = por %p122, %p123
      %p125 = scmp.ne.s32.totalorder %s117, %s119
      %p126 = scmp.eq.s32.totalorder %s25, 1
      %p127 = por %p125, %p126
      %p128 = scmp.ne.s32.totalorder %s119, %s120
      %p129 = scmp.eq.s32.totalorder %s25, 0
      %p130 = por %p128, %p129
      %p131 = scmp.ne.s32.totalorder %s119, %s120
      %p132 = scmp.eq.s32.totalorder %s26, 1
      %p133 = por %p131, %p132
      %p135 = scmp.ne.s32.totalorder %s120, %s134
      %p136 = scmp.eq.s32.totalorder %s26, 0
      %p137 = por %p135, %p136
      %s139 = sadd.s32 %s138, 1
      %p142 = scmp.eq.s32.totalorder %s20, 1
      %p143 = scmp.ne.s32.totalorder %s138, %s140
      %p144 = scmp.eq.s32.totalorder %s20, 0
      %p145 = por %p143, %p144
      %p146 = scmp.ne.s32.totalorder %s138, %s140
      %p147 = scmp.eq.s32.totalorder %s25, 1
      %p148 = por %p146, %p147
      %p149 = scmp.ne.s32.totalorder %s140, %s141
      %p150 = scmp.eq.s32.totalorder %s25, 0
      %p151 = por %p149, %p150
      %p152 = scmp.ne.s32.totalorder %s140, %s141
      %p153 = scmp.eq.s32.totalorder %s26, 1
      %p154 = por %p152, %p153
      %p156 = scmp.ne.s32.totalorder %s141, %s155
      %p157 = scmp.eq.s32.totalorder %s26, 0
      %p158 = por %p156, %p157
      %s159 = ssub.s32 %s20, %s27
      %p160 = scmp.eq.s32.totalorder %s159, 0
      %s162 = sadd.s32 %s161, 1
      %s163 = scalar_select %p160, %s161, %s162
      %p166 = pneg %p160
      %p167 = scmp.eq.s32.totalorder %s20, 1
      %p168 = por %p166, %p167
      %p169 = scmp.ne.s32.totalorder %s161, %s164
      %p170 = scmp.eq.s32.totalorder %s20, 0
      %p171 = por %p169, %p170
      %p172 = scmp.ne.s32.totalorder %s161, %s164
      %p173 = scmp.eq.s32.totalorder %s25, 1
      %p174 = por %p172, %p173
      %p175 = scmp.ne.s32.totalorder %s164, %s165
      %p176 = scmp.eq.s32.totalorder %s25, 0
      %p177 = por %p175, %p176
      %p178 = scmp.ne.s32.totalorder %s164, %s165
      %p179 = scmp.eq.s32.totalorder %s26, 1
      %p180 = por %p178, %p179
      %p182 = scmp.ne.s32.totalorder %s165, %s181
      %p183 = scmp.eq.s32.totalorder %s26, 0
      %p184 = por %p182, %p183
      %p185 = scmp.le.s32.totalorder 1, %s20
      %p186 = scmp.lt.s32.totalorder %s20, 3
      %p187 = pnand %p185, %p186
      %p188 = pneg %p187
      // Predicated region
      $region9: #{tpu_custom_call.1} parent=5 // pred_check
        _
      $region10: #{tpu_custom_call.1} parent=5 // pred_check_branch
        %190 = sbr.rel (%p187) target = $region12
      $region11: #{tpu_custom_call.1} parent=5 // pred_region
        %s191 = ssub.s32 %s20, 1
        // Predicated region
        $region13: #{tpu_custom_call.1} parent=11 // pred_check
          %p192 = pneg %p67
        $region14: #{tpu_custom_call.1} parent=11 // pred_check_branch
          %194 = sbr.rel (%p192) target = $region16
        $region15: #{tpu_custom_call.1} parent=11 // pred_region
          %s196 = ssub.s32 1024, 1024
          %197 = vsyncadd [#allocation6], %s196
          %s198 = sshll.u32 [#allocation5], 4
          %s199 = int_to_ptr.vmem [resolvable:$true] %s198
          %204 = dma.hbm_to_vmem [thread:$0]  %s1, 1024, %s199, [#allocation6], 64, 64, 4
        $region16: #{tpu_custom_call.1} parent=11 // pred_fallthru
          _
        // Predicated region
        $region17: #{tpu_custom_call.1} parent=11 // pred_check
          %p205 = pneg %p88
        $region18: #{tpu_custom_call.1} parent=11 // pred_check_branch
          %207 = sbr.rel (%p205) target = $region20
        $region19: #{tpu_custom_call.1} parent=11 // pred_region
          %s209 = ssub.s32 2048, 2048
          %210 = vsyncadd [#allocation6], %s209
          %s211 = sshll.u32 [#allocation7], 4
          %s212 = int_to_ptr.vmem [resolvable:$true] %s211
          %217 = dma.hbm_to_vmem [thread:$0]  %s2, 2048, %s212, [#allocation6], 128, 128, 8
        $region20: #{tpu_custom_call.1} parent=11 // pred_fallthru
          _
        // Predicated region
        $region21: #{tpu_custom_call.1} parent=11 // pred_check
          %p218 = pneg %p109
        $region22: #{tpu_custom_call.1} parent=11 // pred_check_branch
          %220 = sbr.rel (%p218) target = $region24
        $region23: #{tpu_custom_call.1} parent=11 // pred_region
          %s222 = ssub.s32 1024, 1024
          %223 = vsyncadd [#allocation9], %s222
          %s224 = sshll.u32 [#allocation8], 4
          %s225 = int_to_ptr.vmem [resolvable:$true] %s224
          %230 = dma.hbm_to_vmem [thread:$0]  %s3, 1024, %s225, [#allocation9], 64, 64, 4
        $region24: #{tpu_custom_call.1} parent=11 // pred_fallthru
          _
        // Predicated region
        $region25: #{tpu_custom_call.1} parent=11 // pred_check
          %p231 = pneg %p130
        $region26: #{tpu_custom_call.1} parent=11 // pred_check_branch
          %233 = sbr.rel (%p231) target = $region28
        $region27: #{tpu_custom_call.1} parent=11 // pred_region
          _
        $region28: #{tpu_custom_call.1} parent=11 // pred_fallthru
          _
        // Predicated region
        $region29: #{tpu_custom_call.1} parent=11 // pred_check
          %p234 = pneg %p151
        $region30: #{tpu_custom_call.1} parent=11 // pred_check_branch
          %236 = sbr.rel (%p234) target = $region32
        $region31: #{tpu_custom_call.1} parent=11 // pred_region
          _
        $region32: #{tpu_custom_call.1} parent=11 // pred_fallthru
          _
      $region12: #{tpu_custom_call.1} parent=5 // pred_fallthru
        _
      %p237 = scmp.lt.s32.totalorder %s20, 2
      // Predicated region
      $region33: #{tpu_custom_call.1} parent=5 // pred_check
        %p238 = pneg %p237
      $region34: #{tpu_custom_call.1} parent=5 // pred_check_branch
        %240 = sbr.rel (%p238) target = $region36
      $region35: #{tpu_custom_call.1} parent=5 // pred_region
        // Predicated region
        $region37: #{tpu_custom_call.1} parent=35 // pred_check
          %p241 = pneg %p40
        $region38: #{tpu_custom_call.1} parent=35 // pred_check_branch
          %243 = sbr.rel (%p241) target = $region40
        $region39: #{tpu_custom_call.1} parent=35 // pred_region
          %s244 = sand.u32 %s30, 1
          %s245 = scalar_lea.sflag [#allocation3], %s244
          %s246 = sand.u32 %s30, 1
          %s247 = smul.addr %s246, 32
          %s248 = scalar_lea.vmem [#allocation2], %s247
          %s250 = ssub.s32 512, 512
          %251 = vsyncadd %s245, %s250
          %s252 = smul.addr %s20, 128
          %s253 = scalar_lea.hbm %s0, %s252
          %s254 = sshll.u32 %s248, 4
          %s255 = int_to_ptr.vmem [resolvable:$true] %s254
          %260 = dma.hbm_to_vmem [thread:$0]  %s253, 512, %s255, %s245, 256, 128, 8
        $region40: #{tpu_custom_call.1} parent=35 // pred_fallthru
          _
      $region36: #{tpu_custom_call.1} parent=5 // pred_fallthru
        _
      %p261 = scmp.le.s32.totalorder 1, %s20
      %p262 = scmp.lt.s32.totalorder %s20, 3
      %p263 = pnand %p261, %p262
      %p264 = pneg %p263
      // Predicated region
      $region41: #{tpu_custom_call.1} parent=5 // pred_check
        _
      $region42: #{tpu_custom_call.1} parent=5 // pred_check_branch
        %266 = sbr.rel (%p263) target = $region44
      $region43: #{tpu_custom_call.1} parent=5 // pred_region
        %s267 = ssub.s32 %s20, 1
        %s268 = sand.u32 %s33, 1
        %s269 = scalar_lea.sflag [#allocation3], %s268
        %s270 = sand.u32 %s33, 1
        %s271 = smul.addr %s270, 32
        %s272 = scalar_lea.vmem [#allocation2], %s271
        // Predicated region
        $region45: #{tpu_custom_call.1} parent=43 // pred_check
          %p273 = pneg %p46
        $region46: #{tpu_custom_call.1} parent=43 // pred_check_branch
          %275 = sbr.rel (%p273) target = $region48
        $region47: #{tpu_custom_call.1} parent=43 // pred_region
          %276 = dma.done %s269, 512
        $region48: #{tpu_custom_call.1} parent=43 // pred_fallthru
          _
        // Predicated region
        $region49: #{tpu_custom_call.1} parent=43 // pred_check
          %p277 = pneg %p67
        $region50: #{tpu_custom_call.1} parent=43 // pred_check_branch
          %279 = sbr.rel (%p277) target = $region52
        $region51: #{tpu_custom_call.1} parent=43 // pred_region
          %280 = dma.done [#allocation6], 1024
        $region52: #{tpu_custom_call.1} parent=43 // pred_fallthru
          _
        // Predicated region
        $region53: #{tpu_custom_call.1} parent=43 // pred_check
          %p281 = pneg %p88
        $region54: #{tpu_custom_call.1} parent=43 // pred_check_branch
          %283 = sbr.rel (%p281) target = $region56
        $region55: #{tpu_custom_call.1} parent=43 // pred_region
          %284 = dma.done [#allocation6], 2048
        $region56: #{tpu_custom_call.1} parent=43 // pred_fallthru
          _
        // Predicated region
        $region57: #{tpu_custom_call.1} parent=43 // pred_check
          %p285 = pneg %p109
        $region58: #{tpu_custom_call.1} parent=43 // pred_check_branch
          %287 = sbr.rel (%p285) target = $region60
        $region59: #{tpu_custom_call.1} parent=43 // pred_region
          %288 = dma.done [#allocation9], 1024
        $region60: #{tpu_custom_call.1} parent=43 // pred_fallthru
          _
        %s289 = sand.u32 %s33, 1
        %s290 = scalar_lea.sflag [#allocation3], %s289
        %s291 = sand.u32 %s33, 1
        %s292 = smul.addr %s291, 32
        %s293 = scalar_lea.vmem [#allocation2], %s292
        %p294 = pneg %p46
        %p295 = pneg %p43
        %p296 = pneg %p67
        %p297 = pneg %p64
        %p298 = pneg %p88
        %p299 = pneg %p85
        %p300 = pneg %p109
        %p301 = pneg %p106
        %p302 = pneg %p130
        %p303 = pneg %p127
        %p304 = pneg %p151
        %p305 = pneg %p148
        %p306 = pneg %p177
        %p307 = pneg %p174
        %s308 = sand.u32 %s164, 1
        %s309 = scalar_lea.sflag [#allocation4], %s308
        %s310 = sand.u32 %s164, 1
        %s311 = smul.addr %s310, 32
        %s312 = scalar_lea.vmem [#allocation10], %s311
        %v314 = vld [vmem:[%s272] sm:$0xff]
        %v315 = vld [vmem:[%s272 + $0x8] sm:$0xff]
        %v316 = vld [vmem:[%s272 + $0x10] sm:$0xff]
        %v317 = vld [vmem:[%s272 + $0x18] sm:$0xff]
        %v318 = vpack.c.bf16 %v315, %v314
        %v319 = vpack.c.bf16 %v317, %v316
        %v320 = vld [vmem:[#allocation5] sm:$0xf]
        %v321 = vld [vmem:[#allocation5 + $0x4] sm:$0xf]
        %v322 = vld [vmem:[#allocation5 + $0x8] sm:$0xf]
        %v323 = vld [vmem:[#allocation5 + $0xc] sm:$0xf]
        %v324 = vld [vmem:[#allocation5 + $0x10] sm:$0xf]
        %v325 = vld [vmem:[#allocation5 + $0x14] sm:$0xf]
        %v326 = vld [vmem:[#allocation5 + $0x18] sm:$0xf]
        %v327 = vld [vmem:[#allocation5 + $0x1c] sm:$0xf]
        %v328 = vld [vmem:[#allocation5 + $0x20] sm:$0xf]
        %v329 = vld [vmem:[#allocation5 + $0x24] sm:$0xf]
        %v330 = vld [vmem:[#allocation5 + $0x28] sm:$0xf]
        %v331 = vld [vmem:[#allocation5 + $0x2c] sm:$0xf]
        %v332 = vld [vmem:[#allocation5 + $0x30] sm:$0xf]
        %v333 = vld [vmem:[#allocation5 + $0x34] sm:$0xf]
        %v334 = vld [vmem:[#allocation5 + $0x38] sm:$0xf]
        %v335 = vld [vmem:[#allocation5 + $0x3c] sm:$0xf]
        %v352 = vunpack.c.l.b16 %v320
        %v353 = vunpack.c.l.b16 %v321
        %v354 = vunpack.c.l.b16 %v322
        %v355 = vunpack.c.l.b16 %v323
        %v356 = vunpack.c.l.b16 %v324
        %v357 = vunpack.c.l.b16 %v325
        %v358 = vunpack.c.l.b16 %v326
        %v359 = vunpack.c.l.b16 %v327
        %v360 = vunpack.c.l.b16 %v328
        %v361 = vunpack.c.l.b16 %v329
        %v362 = vunpack.c.l.b16 %v330
        %v363 = vunpack.c.l.b16 %v331
        %v364 = vunpack.c.l.b16 %v332
        %v365 = vunpack.c.l.b16 %v333
        %v366 = vunpack.c.l.b16 %v334
        %v367 = vunpack.c.l.b16 %v335
        %v368 = vpack.c.b16 %v353, %v352
        %v369 = vpack.c.b16 %v355, %v354
        %v370 = vpack.c.b16 %v357, %v356
        %v371 = vpack.c.b16 %v359, %v358
        %v372 = vpack.c.b16 %v361, %v360
        %v373 = vpack.c.b16 %v363, %v362
        %v374 = vpack.c.b16 %v365, %v364
        %v375 = vpack.c.b16 %v367, %v366
        %384 = vmatprep.subr.bf16.mxu0 0
        %385 = vmatpush1.bf16.msra.mxu0 %v368
        %386 = vmatprep.subr.bf16.mxu0 0
        %387 = vmatpush1.bf16.msra.mxu0 %v369
        %388 = vmatprep.subr.bf16.mxu0 0
        %389 = vmatpush1.bf16.msra.mxu0 %v370
        %390 = vmatprep.subr.bf16.mxu0 0
        %391 = vmatpush1.bf16.msra.mxu0 %v371
        %392 = vmatprep.subr.bf16.mxu0 0
        %393 = vmatpush1.bf16.msra.mxu0 %v372
        %394 = vmatprep.subr.bf16.mxu0 0
        %395 = vmatpush1.bf16.msra.mxu0 %v373
        %396 = vmatprep.subr.bf16.mxu0 0
        %397 = vmatpush1.bf16.msra.mxu0 %v374
        %398 = vmatprep.subr.bf16.mxu0 0
        %399 = vmatpush1.bf16.msra.mxu0 %v375
        %400 = vmatprep.subr.bf16.mxu0 0
        %401 = vmatpush1.bf16.msra.mxu0 0
        %402 = vmatprep.subr.bf16.mxu0 0
        %403 = vmatpush1.bf16.msra.mxu0 0
        %404 = vmatprep.subr.bf16.mxu0 0
        %405 = vmatpush1.bf16.msra.mxu0 0
        %406 = vmatprep.subr.bf16.mxu0 0
        %407 = vmatpush1.bf16.msra.mxu0 0
        %408 = vmatprep.subr.bf16.mxu0 0
        %409 = vmatpush1.bf16.msra.mxu0 0
        %410 = vmatprep.subr.bf16.mxu0 0
        %411 = vmatpush1.bf16.msra.mxu0 0
        %412 = vmatprep.subr.bf16.mxu0 0
        %413 = vmatpush1.bf16.msra.mxu0 0
        %414 = vmatprep.subr.bf16.mxu0 0
        %415 = vmatpush1.bf16.msra.mxu0 0
        %416 = vmatprep.mubr.bf16.mxu0 0
        %417 = vmatmul.mubr.bf16.gmra.mrb[0].mxu0 %v318
        %v418 = vpop.f32.mrb[0].mxu0
        %v419 = vadd.f32 0.0, %v418
        %v420 = vpop.f32.mrb[0].mxu0
        %v421 = vpop.f32.mrb[0].mxu0
        %v422 = vadd.f32 0.0, %v421
        %v423 = vpop.f32.mrb[0].mxu0
        %424 = vmatprep.mubr.bf16.mxu0 0
        %425 = vmatmul.mubr.bf16.gmra.mrb[0].mxu0 %v319
        %v426 = vpop.f32.mrb[0].mxu0
        %v427 = vadd.f32 0.0, %v426
        %v428 = vpop.f32.mrb[0].mxu0
        %v429 = vpop.f32.mrb[0].mxu0
        %v430 = vadd.f32 0.0, %v429
        %v431 = vpop.f32.mrb[0].mxu0
        %432 = vdwg.mxu0
        %v433 = vld [vmem:[#allocation7] sm:$0xff]
        %v434 = vld [vmem:[#allocation7 + $0x8] sm:$0xff]
        %v435 = vld [vmem:[#allocation7 + $0x10] sm:$0xff]
        %v436 = vld [vmem:[#allocation7 + $0x18] sm:$0xff]
        %v437 = vld [vmem:[#allocation7 + $0x20] sm:$0xff]
        %v438 = vld [vmem:[#allocation7 + $0x28] sm:$0xff]
        %v439 = vld [vmem:[#allocation7 + $0x30] sm:$0xff]
        %v440 = vld [vmem:[#allocation7 + $0x38] sm:$0xff]
        %v441 = vld [vmem:[#allocation7 + $0x40] sm:$0xff]
        %v442 = vld [vmem:[#allocation7 + $0x48] sm:$0xff]
        %v443 = vld [vmem:[#allocation7 + $0x50] sm:$0xff]
        %v444 = vld [vmem:[#allocation7 + $0x58] sm:$0xff]
        %v445 = vld [vmem:[#allocation7 + $0x60] sm:$0xff]
        %v446 = vld [vmem:[#allocation7 + $0x68] sm:$0xff]
        %v447 = vld [vmem:[#allocation7 + $0x70] sm:$0xff]
        %v448 = vld [vmem:[#allocation7 + $0x78] sm:$0xff]
        %v465 = vunpack.c.l.b16 %v433
        %v466 = vunpack.c.h.b16 %v433
        %v467 = vunpack.c.l.b16 %v434
        %v468 = vunpack.c.h.b16 %v434
        %v469 = vunpack.c.l.b16 %v435
        %v470 = vunpack.c.h.b16 %v435
        %v471 = vunpack.c.l.b16 %v436
        %v472 = vunpack.c.h.b16 %v436
        %v473 = vunpack.c.l.b16 %v437
        %v474 = vunpack.c.h.b16 %v437
        %v475 = vunpack.c.l.b16 %v438
        %v476 = vunpack.c.h.b16 %v438
        %v477 = vunpack.c.l.b16 %v439
        %v478 = vunpack.c.h.b16 %v439
        %v479 = vunpack.c.l.b16 %v440
        %v480 = vunpack.c.h.b16 %v440
        %v481 = vunpack.c.l.b16 %v441
        %v482 = vunpack.c.h.b16 %v441
        %v483 = vunpack.c.l.b16 %v442
        %v484 = vunpack.c.h.b16 %v442
        %v485 = vunpack.c.l.b16 %v443
        %v486 = vunpack.c.h.b16 %v443
        %v487 = vunpack.c.l.b16 %v444
        %v488 = vunpack.c.h.b16 %v444
        %v489 = vunpack.c.l.b16 %v445
        %v490 = vunpack.c.h.b16 %v445
        %v491 = vunpack.c.l.b16 %v446
        %v492 = vunpack.c.h.b16 %v446
        %v493 = vunpack.c.l.b16 %v447
        %v494 = vunpack.c.h.b16 %v447
        %v495 = vunpack.c.l.b16 %v448
        %v496 = vunpack.c.h.b16 %v448
        %v497 = vpack.c.b16 %v467, %v465
        %v498 = vpack.c.b16 %v468, %v466
        %v499 = vpack.c.b16 %v471, %v469
        %v500 = vpack.c.b16 %v472, %v470
        %v501 = vpack.c.b16 %v475, %v473
        %v502 = vpack.c.b16 %v476, %v474
        %v503 = vpack.c.b16 %v479, %v477
        %v504 = vpack.c.b16 %v480, %v478
        %v505 = vpack.c.b16 %v483, %v481
        %v506 = vpack.c.b16 %v484, %v482
        %v507 = vpack.c.b16 %v487, %v485
        %v508 = vpack.c.b16 %v488, %v486
        %v509 = vpack.c.b16 %v491, %v489
        %v510 = vpack.c.b16 %v492, %v490
        %v511 = vpack.c.b16 %v495, %v493
        %v512 = vpack.c.b16 %v496, %v494
        %529 = vmatprep.subr.bf16.mxu0 %v498
        %530 = vmatpush1.bf16.msra.mxu0 %v497
        %531 = vmatprep.subr.bf16.mxu0 %v500
        %532 = vmatpush1.bf16.msra.mxu0 %v499
        %533 = vmatprep.subr.bf16.mxu0 %v502
        %534 = vmatpush1.bf16.msra.mxu0 %v501
        %535 = vmatprep.subr.bf16.mxu0 %v504
        %536 = vmatpush1.bf16.msra.mxu0 %v503
        %537 = vmatprep.subr.bf16.mxu0 %v506
        %538 = vmatpush1.bf16.msra.mxu0 %v505
        %539 = vmatprep.subr.bf16.mxu0 %v508
        %540 = vmatpush1.bf16.msra.mxu0 %v507
        %541 = vmatprep.subr.bf16.mxu0 %v510
        %542 = vmatpush1.bf16.msra.mxu0 %v509
        %543 = vmatprep.subr.bf16.mxu0 %v512
        %544 = vmatpush1.bf16.msra.mxu0 %v511
        %545 = vmatprep.subr.bf16.mxu0 0
        %546 = vmatpush1.bf16.msra.mxu0 0
        %547 = vmatprep.subr.bf16.mxu0 0
        %548 = vmatpush1.bf16.msra.mxu0 0
        %549 = vmatprep.subr.bf16.mxu0 0
        %550 = vmatpush1.bf16.msra.mxu0 0
        %551 = vmatprep.subr.bf16.mxu0 0
        %552 = vmatpush1.bf16.msra.mxu0 0
        %553 = vmatprep.subr.bf16.mxu0 0
        %554 = vmatpush1.bf16.msra.mxu0 0
        %555 = vmatprep.subr.bf16.mxu0 0
        %556 = vmatpush1.bf16.msra.mxu0 0
        %557 = vmatprep.subr.bf16.mxu0 0
        %558 = vmatpush1.bf16.msra.mxu0 0
        %559 = vmatprep.subr.bf16.mxu0 0
        %560 = vmatpush1.bf16.msra.mxu0 0
        %561 = vmatprep.mubr.bf16.mxu0 0
        %562 = vmatmul.mubr.bf16.gmra.mrb[0].mxu0 %v318
        %v563 = vpop.f32.mrb[0].mxu0
        %v564 = vadd.f32 0.0, %v563
        %v565 = vpop.f32.mrb[0].mxu0
        %v566 = vadd.f32 0.0, %v565
        %v567 = vpop.f32.mrb[0].mxu0
        %v568 = vadd.f32 0.0, %v567
        %v569 = vpop.f32.mrb[0].mxu0
        %v570 = vadd.f32 0.0, %v569
        %571 = vmatprep.mubr.bf16.mxu0 0
        %572 = vmatmul.mubr.bf16.gmra.mrb[0].mxu0 %v319
        %v573 = vpop.f32.mrb[0].mxu0
        %v574 = vadd.f32 0.0, %v573
        %v575 = vpop.f32.mrb[0].mxu0
        %v576 = vadd.f32 0.0, %v575
        %v577 = vpop.f32.mrb[0].mxu0
        %v578 = vadd.f32 0.0, %v577
        %v579 = vpop.f32.mrb[0].mxu0
        %v580 = vadd.f32 0.0, %v579
        %581 = vdwg.mxu0
        %v582 = vpack.c.bf16 %v422, %v419
        %v583 = vpack.c.bf16 %v430, %v427
        %v584 = vpack.c.bf16 %v568, %v564
        %v585 = vpack.c.bf16 %v578, %v574
        %v586 = vpack.c.bf16 %v570, %v566
        %v587 = vpack.c.bf16 %v580, %v576
        %590 = vrot.lane.b32.xlu0 %v582, 96
        %v591 = vpop.permute.xlu0 %590
        %592 = vrot.lane.b32.xlu0 %v583, 96
        %v593 = vpop.permute.xlu0 %592
        %594 = vrot.lane.b32.xlu0 %v582, 64
        %v595 = vpop.permute.xlu0 %594
        %596 = vrot.lane.b32.xlu0 %v583, 64
        %v597 = vpop.permute.xlu0 %596
        %598 = vrot.lane.b32.xlu0 %v582, 32
        %v599 = vpop.permute.xlu0 %598
        %600 = vrot.lane.b32.xlu0 %v583, 32
        %v601 = vpop.permute.xlu0 %600
        %604 = vrot.lane.b32.xlu0 %v584, 96
        %v605 = vpop.permute.xlu0 %604
        %606 = vrot.lane.b32.xlu0 %v585, 96
        %v607 = vpop.permute.xlu0 %606
        %608 = vrot.lane.b32.xlu0 %v584, 64
        %v609 = vpop.permute.xlu0 %608
        %610 = vrot.lane.b32.xlu0 %v585, 64
        %v611 = vpop.permute.xlu0 %610
        %612 = vrot.lane.b32.xlu0 %v584, 32
        %v613 = vpop.permute.xlu0 %612
        %614 = vrot.lane.b32.xlu0 %v585, 32
        %v615 = vpop.permute.xlu0 %614
        %618 = vrot.lane.b32.xlu0 %v586, 96
        %v619 = vpop.permute.xlu0 %618
        %620 = vrot.lane.b32.xlu0 %v587, 96
        %v621 = vpop.permute.xlu0 %620
        %624 = vrot.lane.b32.xlu0 %v586, 64
        %v625 = vpop.permute.xlu0 %624
        %626 = vrot.lane.b32.xlu0 %v587, 64
        %v627 = vpop.permute.xlu0 %626
        %630 = vrot.lane.b32.xlu0 %v586, 32
        %v631 = vpop.permute.xlu0 %630
        %632 = vrot.lane.b32.xlu0 %v587, 32
        %v633 = vpop.permute.xlu0 %632
        %vm636 = vcmask 261120
        %v638 = vsel %vm636, %v582, 0
        %v641 = vsel %vm636, %v583, 0
        %v644 = vsel %vm636, %v584, 0
        %v647 = vsel %vm636, %v585, 0
        %649 = vmatprep.subr.bf16.mxu0 0
        %650 = vmatpush1.bf16.xpose.msra.mxu0 %v644
        %651 = vmatprep.subr.bf16.mxu0 0
        %652 = vmatpush1.bf16.xpose.msra.mxu0 %v647
        %653 = vmatprep.subr.bf16.mxu0 0
        %654 = vmatpush1.bf16.xpose.msra.mxu0 0
        %655 = vmatprep.subr.bf16.mxu0 0
        %656 = vmatpush1.bf16.xpose.msra.mxu0 0
        %657 = vmatprep.subr.bf16.mxu0 0
        %658 = vmatpush1.bf16.xpose.msra.mxu0 0
        %659 = vmatprep.subr.bf16.mxu0 0
        %660 = vmatpush1.bf16.xpose.msra.mxu0 0
        %661 = vmatprep.subr.bf16.mxu0 0
        %662 = vmatpush1.bf16.xpose.msra.mxu0 0
        %663 = vmatprep.subr.bf16.mxu0 0
        %664 = vmatpush1.bf16.xpose.msra.mxu0 0
        %665 = vmatprep.subr.bf16.mxu0 0
        %666 = vmatpush1.bf16.xpose.msra.mxu0 0
        %667 = vmatprep.subr.bf16.mxu0 0
        %668 = vmatpush1.bf16.xpose.msra.mxu0 0
        %669 = vmatprep.subr.bf16.mxu0 0
        %670 = vmatpush1.bf16.xpose.msra.mxu0 0
        %671 = vmatprep.subr.bf16.mxu0 0
        %672 = vmatpush1.bf16.xpose.msra.mxu0 0
        %673 = vmatprep.subr.bf16.mxu0 0
        %674 = vmatpush1.bf16.xpose.msra.mxu0 0
        %675 = vmatprep.subr.bf16.mxu0 0
        %676 = vmatpush1.bf16.xpose.msra.mxu0 0
        %677 = vmatprep.subr.bf16.mxu0 0
        %678 = vmatpush1.bf16.xpose.msra.mxu0 0
        %679 = vmatprep.subr.bf16.mxu0 0
        %680 = vmatpush1.bf16.xpose.msra.mxu0 0
        %681 = vmatprep.mubr.bf16.mxu0 0
        %682 = vmatmul.mubr.bf16.gmra.mrb[0].mxu0 %v638
        %v683 = vpop.f32.mrb[0].mxu0
        %v684 = vadd.f32 0.0, %v683
        %v685 = vpop.f32.mrb[0].mxu0
        %v686 = vpop.f32.mrb[0].mxu0
        %v687 = vadd.f32 0.0, %v686
        %v688 = vpop.f32.mrb[0].mxu0
        %689 = vmatprep.mubr.bf16.mxu0 0
        %690 = vmatmul.mubr.bf16.gmra.mrb[0].mxu0 %v641
        %v691 = vpop.f32.mrb[0].mxu0
        %v692 = vadd.f32 0.0, %v691
        %v693 = vpop.f32.mrb[0].mxu0
        %v694 = vpop.f32.mrb[0].mxu0
        %v695 = vadd.f32 0.0, %v694
        %v696 = vpop.f32.mrb[0].mxu0
        %697 = vdwg.mxu0
        %v699 = vsel %vm636, %v591, 0
        %v702 = vsel %vm636, %v593, 0
        %v705 = vsel %vm636, %v605, 0
        %v708 = vsel %vm636, %v607, 0
        %710 = vmatprep.subr.bf16.mxu0 0
        %711 = vmatpush1.bf16.xpose.msra.mxu0 %v705
        %712 = vmatprep.subr.bf16.mxu0 0
        %713 = vmatpush1.bf16.xpose.msra.mxu0 %v708
        %714 = vmatprep.subr.bf16.mxu0 0
        %715 = vmatpush1.bf16.xpose.msra.mxu0 0
        %716 = vmatprep.subr.bf16.mxu0 0
        %717 = vmatpush1.bf16.xpose.msra.mxu0 0
        %718 = vmatprep.subr.bf16.mxu0 0
        %719 = vmatpush1.bf16.xpose.msra.mxu0 0
        %720 = vmatprep.subr.bf16.mxu0 0
        %721 = vmatpush1.bf16.xpose.msra.mxu0 0
        %722 = vmatprep.subr.bf16.mxu0 0
        %723 = vmatpush1.bf16.xpose.msra.mxu0 0
        %724 = vmatprep.subr.bf16.mxu0 0
        %725 = vmatpush1.bf16.xpose.msra.mxu0 0
        %726 = vmatprep.subr.bf16.mxu0 0
        %727 = vmatpush1.bf16.xpose.msra.mxu0 0
        %728 = vmatprep.subr.bf16.mxu0 0
        %729 = vmatpush1.bf16.xpose.msra.mxu0 0
        %730 = vmatprep.subr.bf16.mxu0 0
        %731 = vmatpush1.bf16.xpose.msra.mxu0 0
        %732 = vmatprep.subr.bf16.mxu0 0
        %733 = vmatpush1.bf16.xpose.msra.mxu0 0
        %734 = vmatprep.subr.bf16.mxu0 0
        %735 = vmatpush1.bf16.xpose.msra.mxu0 0
        %736 = vmatprep.subr.bf16.mxu0 0
        %737 = vmatpush1.bf16.xpose.msra.mxu0 0
        %738 = vmatprep.subr.bf16.mxu0 0
        %739 = vmatpush1.bf16.xpose.msra.mxu0 0
        %740 = vmatprep.subr.bf16.mxu0 0
        %741 = vmatpush1.bf16.xpose.msra.mxu0 0
        %742 = vmatprep.mubr.bf16.mxu0 0
        %743 = vmatmul.mubr.bf16.gmra.mrb[0].mxu0 %v699
        %v744 = vpop.f32.mrb[0].mxu0
        %v745 = vadd.f32 0.0, %v744
        %v746 = vpop.f32.mrb[0].mxu0
        %v747 = vpop.f32.mrb[0].mxu0
        %v748 = vadd.f32 0.0, %v747
        %v749 = vpop.f32.mrb[0].mxu0
        %750 = vmatprep.mubr.bf16.mxu0 0
        %751 = vmatmul.mubr.bf16.gmra.mrb[0].mxu0 %v702
        %v752 = vpop.f32.mrb[0].mxu0
        %v753 = vadd.f32 0.0, %v752
        %v754 = vpop.f32.mrb[0].mxu0
        %v755 = vpop.f32.mrb[0].mxu0
        %v756 = vadd.f32 0.0, %v755
        %v757 = vpop.f32.mrb[0].mxu0
        %758 = vdwg.mxu0
        %v760 = vsel %vm636, %v595, 0
        %v763 = vsel %vm636, %v597, 0
        %v766 = vsel %vm636, %v609, 0
        %v769 = vsel %vm636, %v611, 0
        %771 = vmatprep.subr.bf16.mxu0 0
        %772 = vmatpush1.bf16.xpose.msra.mxu0 %v766
        %773 = vmatprep.subr.bf16.mxu0 0
        %774 = vmatpush1.bf16.xpose.msra.mxu0 %v769
        %775 = vmatprep.subr.bf16.mxu0 0
        %776 = vmatpush1.bf16.xpose.msra.mxu0 0
        %777 = vmatprep.subr.bf16.mxu0 0
        %778 = vmatpush1.bf16.xpose.msra.mxu0 0
        %779 = vmatprep.subr.bf16.mxu0 0
        %780 = vmatpush1.bf16.xpose.msra.mxu0 0
        %781 = vmatprep.subr.bf16.mxu0 0
        %782 = vmatpush1.bf16.xpose.msra.mxu0 0
        %783 = vmatprep.subr.bf16.mxu0 0
        %784 = vmatpush1.bf16.xpose.msra.mxu0 0
        %785 = vmatprep.subr.bf16.mxu0 0
        %786 = vmatpush1.bf16.xpose.msra.mxu0 0
        %787 = vmatprep.subr.bf16.mxu0 0
        %788 = vmatpush1.bf16.xpose.msra.mxu0 0
        %789 = vmatprep.subr.bf16.mxu0 0
        %790 = vmatpush1.bf16.xpose.msra.mxu0 0
        %791 = vmatprep.subr.bf16.mxu0 0
        %792 = vmatpush1.bf16.xpose.msra.mxu0 0
        %793 = vmatprep.subr.bf16.mxu0 0
        %794 = vmatpush1.bf16.xpose.msra.mxu0 0
        %795 = vmatprep.subr.bf16.mxu0 0
        %796 = vmatpush1.bf16.xpose.msra.mxu0 0
        %797 = vmatprep.subr.bf16.mxu0 0
        %798 = vmatpush1.bf16.xpose.msra.mxu0 0
        %799 = vmatprep.subr.bf16.mxu0 0
        %800 = vmatpush1.bf16.xpose.msra.mxu0 0
        %801 = vmatprep.subr.bf16.mxu0 0
        %802 = vmatpush1.bf16.xpose.msra.mxu0 0
        %803 = vmatprep.mubr.bf16.mxu0 0
        %804 = vmatmul.mubr.bf16.gmra.mrb[0].mxu0 %v760
        %v805 = vpop.f32.mrb[0].mxu0
        %v806 = vadd.f32 0.0, %v805
        %v807 = vpop.f32.mrb[0].mxu0
        %v808 = vpop.f32.mrb[0].mxu0
        %v809 = vadd.f32 0.0, %v808
        %v810 = vpop.f32.mrb[0].mxu0
        %811 = vmatprep.mubr.bf16.mxu0 0
        %812 = vmatmul.mubr.bf16.gmra.mrb[0].mxu0 %v763
        %v813 = vpop.f32.mrb[0].mxu0
        %v814 = vadd.f32 0.0, %v813
        %v815 = vpop.f32.mrb[0].mxu0
        %v816 = vpop.f32.mrb[0].mxu0
        %v817 = vadd.f32 0.0, %v816
        %v818 = vpop.f32.mrb[0].mxu0
        %819 = vdwg.mxu0
        %v821 = vsel %vm636, %v599, 0
        %v824 = vsel %vm636, %v601, 0
        %v827 = vsel %vm636, %v613, 0
        %v830 = vsel %vm636, %v615, 0
        %832 = vmatprep.subr.bf16.mxu0 0
        %833 = vmatpush1.bf16.xpose.msra.mxu0 %v827
        %834 = vmatprep.subr.bf16.mxu0 0
        %835 = vmatpush1.bf16.xpose.msra.mxu0 %v830
        %836 = vmatprep.subr.bf16.mxu0 0
        %837 = vmatpush1.bf16.xpose.msra.mxu0 0
        %838 = vmatprep.subr.bf16.mxu0 0
        %839 = vmatpush1.bf16.xpose.msra.mxu0 0
        %840 = vmatprep.subr.bf16.mxu0 0
        %841 = vmatpush1.bf16.xpose.msra.mxu0 0
        %842 = vmatprep.subr.bf16.mxu0 0
        %843 = vmatpush1.bf16.xpose.msra.mxu0 0
        %844 = vmatprep.subr.bf16.mxu0 0
        %845 = vmatpush1.bf16.xpose.msra.mxu0 0
        %846 = vmatprep.subr.bf16.mxu0 0
        %847 = vmatpush1.bf16.xpose.msra.mxu0 0
        %848 = vmatprep.subr.bf16.mxu0 0
        %849 = vmatpush1.bf16.xpose.msra.mxu0 0
        %850 = vmatprep.subr.bf16.mxu0 0
        %851 = vmatpush1.bf16.xpose.msra.mxu0 0
        %852 = vmatprep.subr.bf16.mxu0 0
        %853 = vmatpush1.bf16.xpose.msra.mxu0 0
        %854 = vmatprep.subr.bf16.mxu0 0
        %855 = vmatpush1.bf16.xpose.msra.mxu0 0
        %856 = vmatprep.subr.bf16.mxu0 0
        %857 = vmatpush1.bf16.xpose.msra.mxu0 0
        %858 = vmatprep.subr.bf16.mxu0 0
        %859 = vmatpush1.bf16.xpose.msra.mxu0 0
        %860 = vmatprep.subr.bf16.mxu0 0
        %861 = vmatpush1.bf16.xpose.msra.mxu0 0
        %862 = vmatprep.subr.bf16.mxu0 0
        %863 = vmatpush1.bf16.xpose.msra.mxu0 0
        %864 = vmatprep.mubr.bf16.mxu0 0
        %865 = vmatmul.mubr.bf16.gmra.mrb[0].mxu0 %v821
        %v866 = vpop.f32.mrb[0].mxu0
        %v867 = vadd.f32 0.0, %v866
        %v868 = vpop.f32.mrb[0].mxu0
        %v869 = vpop.f32.mrb[0].mxu0
        %v870 = vadd.f32 0.0, %v869
        %v871 = vpop.f32.mrb[0].mxu0
        %872 = vmatprep.mubr.bf16.mxu0 0
        %873 = vmatmul.mubr.bf16.gmra.mrb[0].mxu0 %v824
        %v874 = vpop.f32.mrb[0].mxu0
        %v875 = vadd.f32 0.0, %v874
        %v876 = vpop.f32.mrb[0].mxu0
        %v877 = vpop.f32.mrb[0].mxu0
        %v878 = vadd.f32 0.0, %v877
        %v879 = vpop.f32.mrb[0].mxu0
        %880 = vdwg.mxu0
        %v881 = vsel %vm636, %v684, -inf
        %882 = vmax.xlane.f32.xlu0 %v881
        %v883 = vpop.xlane.xlu0 %882
        %v884 = vsel %vm636, %v687, -inf
        %885 = vmax.xlane.f32.xlu0 %v884
        %v886 = vpop.xlane.xlu0 %885
        %v887 = vsel %vm636, %v692, -inf
        %888 = vmax.xlane.f32.xlu0 %v887
        %v889 = vpop.xlane.xlu0 %888
        %v890 = vsel %vm636, %v695, -inf
        %891 = vmax.xlane.f32.xlu0 %v890
        %v892 = vpop.xlane.xlu0 %891
        %v893 = vsel %vm636, %v745, -inf
        %894 = vmax.xlane.f32.xlu0 %v893
        %v895 = vpop.xlane.xlu0 %894
        %v896 = vsel %vm636, %v748, -inf
        %897 = vmax.xlane.f32.xlu0 %v896
        %v898 = vpop.xlane.xlu0 %897
        %v899 = vsel %vm636, %v753, -inf
        %900 = vmax.xlane.f32.xlu0 %v899
        %v901 = vpop.xlane.xlu0 %900
        %v902 = vsel %vm636, %v756, -inf
        %903 = vmax.xlane.f32.xlu0 %v902
        %v904 = vpop.xlane.xlu0 %903
        %v905 = vsel %vm636, %v806, -inf
        %906 = vmax.xlane.f32.xlu0 %v905
        %v907 = vpop.xlane.xlu0 %906
        %v908 = vsel %vm636, %v809, -inf
        %909 = vmax.xlane.f32.xlu0 %v908
        %v910 = vpop.xlane.xlu0 %909
        %v911 = vsel %vm636, %v814, -inf
        %912 = vmax.xlane.f32.xlu0 %v911
        %v913 = vpop.xlane.xlu0 %912
        %v914 = vsel %vm636, %v817, -inf
        %915 = vmax.xlane.f32.xlu0 %v914
        %v916 = vpop.xlane.xlu0 %915
        %v917 = vsel %vm636, %v867, -inf
        %918 = vmax.xlane.f32.xlu0 %v917
        %v919 = vpop.xlane.xlu0 %918
        %v920 = vsel %vm636, %v870, -inf
        %921 = vmax.xlane.f32.xlu0 %v920
        %v922 = vpop.xlane.xlu0 %921
        %v923 = vsel %vm636, %v875, -inf
        %924 = vmax.xlane.f32.xlu0 %v923
        %v925 = vpop.xlane.xlu0 %924
        %v926 = vsel %vm636, %v878, -inf
        %927 = vmax.xlane.f32.xlu0 %v926
        %v928 = vpop.xlane.xlu0 %927
        %v929 = vsub.f32 %v684, %v883
        %v930 = vsub.f32 %v687, %v886
        %v931 = vsub.f32 %v692, %v889
        %v932 = vsub.f32 %v695, %v892
        %v933 = vsub.f32 %v745, %v895
        %v934 = vsub.f32 %v748, %v898
        %v935 = vsub.f32 %v753, %v901
        %v936 = vsub.f32 %v756, %v904
        %v937 = vsub.f32 %v806, %v907
        %v938 = vsub.f32 %v809, %v910
        %v939 = vsub.f32 %v814, %v913
        %v940 = vsub.f32 %v817, %v916
        %v941 = vsub.f32 %v867, %v919
        %v942 = vsub.f32 %v870, %v922
        %v943 = vsub.f32 %v875, %v925
        %v944 = vsub.f32 %v878, %v928
        %v945 = vmul.f32 %v929, 1.442695
        %v946 = vpow.pop %v945
        %v947 = vmul.f32 %v930, 1.442695
        %v948 = vpow.pop %v947
        %v949 = vmul.f32 %v931, 1.442695
        %v950 = vpow.pop %v949
        %v951 = vmul.f32 %v932, 1.442695
        %v952 = vpow.pop %v951
        %v953 = vmul.f32 %v933, 1.442695
        %v954 = vpow.pop %v953
        %v955 = vmul.f32 %v934, 1.442695
        %v956 = vpow.pop %v955
        %v957 = vmul.f32 %v935, 1.442695
        %v958 = vpow.pop %v957
        %v959 = vmul.f32 %v936, 1.442695
        %v960 = vpow.pop %v959
        %v961 = vmul.f32 %v937, 1.442695
        %v962 = vpow.pop %v961
        %v963 = vmul.f32 %v938, 1.442695
        %v964 = vpow.pop %v963
        %v965 = vmul.f32 %v939, 1.442695
        %v966 = vpow.pop %v965
        %v967 = vmul.f32 %v940, 1.442695
        %v968 = vpow.pop %v967
        %v969 = vmul.f32 %v941, 1.442695
        %v970 = vpow.pop %v969
        %v971 = vmul.f32 %v942, 1.442695
        %v972 = vpow.pop %v971
        %v973 = vmul.f32 %v943, 1.442695
        %v974 = vpow.pop %v973
        %v975 = vmul.f32 %v944, 1.442695
        %v976 = vpow.pop %v975
        %v977 = vsel %vm636, %v946, 0.0
        %978 = vadd.xlane.f32.xlu0 %v977
        %v979 = vpop.xlane.xlu0 %978
        %v980 = vsel %vm636, %v948, 0.0
        %981 = vadd.xlane.f32.xlu0 %v980
        %v982 = vpop.xlane.xlu0 %981
        %v983 = vsel %vm636, %v950, 0.0
        %984 = vadd.xlane.f32.xlu0 %v983
        %v985 = vpop.xlane.xlu0 %984
        %v986 = vsel %vm636, %v952, 0.0
        %987 = vadd.xlane.f32.xlu0 %v986
        %v988 = vpop.xlane.xlu0 %987
        %v989 = vsel %vm636, %v954, 0.0
        %990 = vadd.xlane.f32.xlu0 %v989
        %v991 = vpop.xlane.xlu0 %990
        %v992 = vsel %vm636, %v956, 0.0
        %993 = vadd.xlane.f32.xlu0 %v992
        %v994 = vpop.xlane.xlu0 %993
        %v995 = vsel %vm636, %v958, 0.0
        %996 = vadd.xlane.f32.xlu0 %v995
        %v997 = vpop.xlane.xlu0 %996
        %v998 = vsel %vm636, %v960, 0.0
        %999 = vadd.xlane.f32.xlu0 %v998
        %v1000 = vpop.xlane.xlu0 %999
        %v1001 = vsel %vm636, %v962, 0.0
        %1002 = vadd.xlane.f32.xlu0 %v1001
        %v1003 = vpop.xlane.xlu0 %1002
        %v1004 = vsel %vm636, %v964, 0.0
        %1005 = vadd.xlane.f32.xlu0 %v1004
        %v1006 = vpop.xlane.xlu0 %1005
        %v1007 = vsel %vm636, %v966, 0.0
        %1008 = vadd.xlane.f32.xlu0 %v1007
        %v1009 = vpop.xlane.xlu0 %1008
        %v1010 = vsel %vm636, %v968, 0.0
        %1011 = vadd.xlane.f32.xlu0 %v1010
        %v1012 = vpop.xlane.xlu0 %1011
        %v1013 = vsel %vm636, %v970, 0.0
        %1014 = vadd.xlane.f32.xlu0 %v1013
        %v1015 = vpop.xlane.xlu0 %1014
        %v1016 = vsel %vm636, %v972, 0.0
        %1017 = vadd.xlane.f32.xlu0 %v1016
        %v1018 = vpop.xlane.xlu0 %1017
        %v1019 = vsel %vm636, %v974, 0.0
        %1020 = vadd.xlane.f32.xlu0 %v1019
        %v1021 = vpop.xlane.xlu0 %1020
        %v1022 = vsel %vm636, %v976, 0.0
        %1023 = vadd.xlane.f32.xlu0 %v1022
        %v1024 = vpop.xlane.xlu0 %1023
        %v1025 = vpack.c.bf16 %v948, %v946
        %v1026 = vpack.c.bf16 %v952, %v950
        %v1027 = vpack.c.bf16 %v956, %v954
        %v1028 = vpack.c.bf16 %v960, %v958
        %v1029 = vpack.c.bf16 %v964, %v962
        %v1030 = vpack.c.bf16 %v968, %v966
        %v1031 = vpack.c.bf16 %v972, %v970
        %v1032 = vpack.c.bf16 %v976, %v974
        %v1034 = vsel %vm636, %v1025, 0
        %v1037 = vsel %vm636, %v1026, 0
        %1039 = vmatprep.subr.bf16.mxu0 0
        %1040 = vmatpush1.bf16.msra.mxu0 %v586
        %1041 = vmatprep.subr.bf16.mxu0 0
        %1042 = vmatpush1.bf16.msra.mxu0 %v587
        %1043 = vmatprep.subr.bf16.mxu0 0
        %1044 = vmatpush1.bf16.msra.mxu0 0
        %1045 = vmatprep.subr.bf16.mxu0 0
        %1046 = vmatpush1.bf16.msra.mxu0 0
        %1047 = vmatprep.subr.bf16.mxu0 0
        %1048 = vmatpush1.bf16.msra.mxu0 0
        %1049 = vmatprep.subr.bf16.mxu0 0
        %1050 = vmatpush1.bf16.msra.mxu0 0
        %1051 = vmatprep.subr.bf16.mxu0 0
        %1052 = vmatpush1.bf16.msra.mxu0 0
        %1053 = vmatprep.subr.bf16.mxu0 0
        %1054 = vmatpush1.bf16.msra.mxu0 0
        %1055 = vmatprep.subr.bf16.mxu0 0
        %1056 = vmatpush1.bf16.msra.mxu0 0
        %1057 = vmatprep.subr.bf16.mxu0 0
        %1058 = vmatpush1.bf16.msra.mxu0 0
        %1059 = vmatprep.subr.bf16.mxu0 0
        %1060 = vmatpush1.bf16.msra.mxu0 0
        %1061 = vmatprep.subr.bf16.mxu0 0
        %1062 = vmatpush1.bf16.msra.mxu0 0
        %1063 = vmatprep.subr.bf16.mxu0 0
        %1064 = vmatpush1.bf16.msra.mxu0 0
        %1065 = vmatprep.subr.bf16.mxu0 0
        %1066 = vmatpush1.bf16.msra.mxu0 0
        %1067 = vmatprep.subr.bf16.mxu0 0
        %1068 = vmatpush1.bf16.msra.mxu0 0
        %1069 = vmatprep.subr.bf16.mxu0 0
        %1070 = vmatpush1.bf16.msra.mxu0 0
        %1071 = vmatprep.mubr.bf16.mxu0 0
        %1072 = vmatmul.mubr.bf16.gmra.mrb[0].mxu0 %v1034
        %v1073 = vpop.f32.mrb[0].mxu0
        %v1074 = vadd.f32 0.0, %v1073
        %v1075 = vpop.f32.mrb[0].mxu0
        %v1076 = vpop.f32.mrb[0].mxu0
        %v1077 = vadd.f32 0.0, %v1076
        %v1078 = vpop.f32.mrb[0].mxu0
        %1079 = vmatprep.mubr.bf16.mxu0 0
        %1080 = vmatmul.mubr.bf16.gmra.mrb[0].mxu0 %v1037
        %v1081 = vpop.f32.mrb[0].mxu0
        %v1082 = vadd.f32 0.0, %v1081
        %v1083 = vpop.f32.mrb[0].mxu0
        %v1084 = vpop.f32.mrb[0].mxu0
        %v1085 = vadd.f32 0.0, %v1084
        %v1086 = vpop.f32.mrb[0].mxu0
        %1087 = vdwg.mxu0
        %v1089 = vsel %vm636, %v1027, 0
        %v1092 = vsel %vm636, %v1028, 0
        %1094 = vmatprep.subr.bf16.mxu0 0
        %1095 = vmatpush1.bf16.msra.mxu0 %v619
        %1096 = vmatprep.subr.bf16.mxu0 0
        %1097 = vmatpush1.bf16.msra.mxu0 %v621
        %1098 = vmatprep.subr.bf16.mxu0 0
        %1099 = vmatpush1.bf16.msra.mxu0 0
        %1100 = vmatprep.subr.bf16.mxu0 0
        %1101 = vmatpush1.bf16.msra.mxu0 0
        %1102 = vmatprep.subr.bf16.mxu0 0
        %1103 = vmatpush1.bf16.msra.mxu0 0
        %1104 = vmatprep.subr.bf16.mxu0 0
        %1105 = vmatpush1.bf16.msra.mxu0 0
        %1106 = vmatprep.subr.bf16.mxu0 0
        %1107 = vmatpush1.bf16.msra.mxu0 0
        %1108 = vmatprep.subr.bf16.mxu0 0
        %1109 = vmatpush1.bf16.msra.mxu0 0
        %1110 = vmatprep.subr.bf16.mxu0 0
        %1111 = vmatpush1.bf16.msra.mxu0 0
        %1112 = vmatprep.subr.bf16.mxu0 0
        %1113 = vmatpush1.bf16.msra.mxu0 0
        %1114 = vmatprep.subr.bf16.mxu0 0
        %1115 = vmatpush1.bf16.msra.mxu0 0
        %1116 = vmatprep.subr.bf16.mxu0 0
        %1117 = vmatpush1.bf16.msra.mxu0 0
        %1118 = vmatprep.subr.bf16.mxu0 0
        %1119 = vmatpush1.bf16.msra.mxu0 0
        %1120 = vmatprep.subr.bf16.mxu0 0
        %1121 = vmatpush1.bf16.msra.mxu0 0
        %1122 = vmatprep.subr.bf16.mxu0 0
        %1123 = vmatpush1.bf16.msra.mxu0 0
        %1124 = vmatprep.subr.bf16.mxu0 0
        %1125 = vmatpush1.bf16.msra.mxu0 0
        %1126 = vmatprep.mubr.bf16.mxu0 0
        %1127 = vmatmul.mubr.bf16.gmra.mrb[0].mxu0 %v1089
        %v1128 = vpop.f32.mrb[0].mxu0
        %v1129 = vadd.f32 0.0, %v1128
        %v1130 = vpop.f32.mrb[0].mxu0
        %v1131 = vpop.f32.mrb[0].mxu0
        %v1132 = vadd.f32 0.0, %v1131
        %v1133 = vpop.f32.mrb[0].mxu0
        %1134 = vmatprep.mubr.bf16.mxu0 0
        %1135 = vmatmul.mubr.bf16.gmra.mrb[0].mxu0 %v1092
        %v1136 = vpop.f32.mrb[0].mxu0
        %v1137 = vadd.f32 0.0, %v1136
        %v1138 = vpop.f32.mrb[0].mxu0
        %v1139 = vpop.f32.mrb[0].mxu0
        %v1140 = vadd.f32 0.0, %v1139
        %v1141 = vpop.f32.mrb[0].mxu0
        %1142 = vdwg.mxu0
        %v1144 = vsel %vm636, %v1029, 0
        %v1147 = vsel %vm636, %v1030, 0
        %1149 = vmatprep.subr.bf16.mxu0 0
        %1150 = vmatpush1.bf16.msra.mxu0 %v625
        %1151 = vmatprep.subr.bf16.mxu0 0
        %1152 = vmatpush1.bf16.msra.mxu0 %v627
        %1153 = vmatprep.subr.bf16.mxu0 0
        %1154 = vmatpush1.bf16.msra.mxu0 0
        %1155 = vmatprep.subr.bf16.mxu0 0
        %1156 = vmatpush1.bf16.msra.mxu0 0
        %1157 = vmatprep.subr.bf16.mxu0 0
        %1158 = vmatpush1.bf16.msra.mxu0 0
        %1159 = vmatprep.subr.bf16.mxu0 0
        %1160 = vmatpush1.bf16.msra.mxu0 0
        %1161 = vmatprep.subr.bf16.mxu0 0
        %1162 = vmatpush1.bf16.msra.mxu0 0
        %1163 = vmatprep.subr.bf16.mxu0 0
        %1164 = vmatpush1.bf16.msra.mxu0 0
        %1165 = vmatprep.subr.bf16.mxu0 0
        %1166 = vmatpush1.bf16.msra.mxu0 0
        %1167 = vmatprep.subr.bf16.mxu0 0
        %1168 = vmatpush1.bf16.msra.mxu0 0
        %1169 = vmatprep.subr.bf16.mxu0 0
        %1170 = vmatpush1.bf16.msra.mxu0 0
        %1171 = vmatprep.subr.bf16.mxu0 0
        %1172 = vmatpush1.bf16.msra.mxu0 0
        %1173 = vmatprep.subr.bf16.mxu0 0
        %1174 = vmatpush1.bf16.msra.mxu0 0
        %1175 = vmatprep.subr.bf16.mxu0 0
        %1176 = vmatpush1.bf16.msra.mxu0 0
        %1177 = vmatprep.subr.bf16.mxu0 0
        %1178 = vmatpush1.bf16.msra.mxu0 0
        %1179 = vmatprep.subr.bf16.mxu0 0
        %1180 = vmatpush1.bf16.msra.mxu0 0
        %1181 = vmatprep.mubr.bf16.mxu0 0
        %1182 = vmatmul.mubr.bf16.gmra.mrb[0].mxu0 %v1144
        %v1183 = vpop.f32.mrb[0].mxu0
        %v1184 = vadd.f32 0.0, %v1183
        %v1185 = vpop.f32.mrb[0].mxu0
        %v1186 = vpop.f32.mrb[0].mxu0
        %v1187 = vadd.f32 0.0, %v1186
        %v1188 = vpop.f32.mrb[0].mxu0
        %1189 = vmatprep.mubr.bf16.mxu0 0
        %1190 = vmatmul.mubr.bf16.gmra.mrb[0].mxu0 %v1147
        %v1191 = vpop.f32.mrb[0].mxu0
        %v1192 = vadd.f32 0.0, %v1191
        %v1193 = vpop.f32.mrb[0].mxu0
        %v1194 = vpop.f32.mrb[0].mxu0
        %v1195 = vadd.f32 0.0, %v1194
        %v1196 = vpop.f32.mrb[0].mxu0
        %1197 = vdwg.mxu0
        %v1199 = vsel %vm636, %v1031, 0
        %v1202 = vsel %vm636, %v1032, 0
        %1204 = vmatprep.subr.bf16.mxu0 0
        %1205 = vmatpush1.bf16.msra.mxu0 %v631
        %1206 = vmatprep.subr.bf16.mxu0 0
        %1207 = vmatpush1.bf16.msra.mxu0 %v633
        %1208 = vmatprep.subr.bf16.mxu0 0
        %1209 = vmatpush1.bf16.msra.mxu0 0
        %1210 = vmatprep.subr.bf16.mxu0 0
        %1211 = vmatpush1.bf16.msra.mxu0 0
        %1212 = vmatprep.subr.bf16.mxu0 0
        %1213 = vmatpush1.bf16.msra.mxu0 0
        %1214 = vmatprep.subr.bf16.mxu0 0
        %1215 = vmatpush1.bf16.msra.mxu0 0
        %1216 = vmatprep.subr.bf16.mxu0 0
        %1217 = vmatpush1.bf16.msra.mxu0 0
        %1218 = vmatprep.subr.bf16.mxu0 0
        %1219 = vmatpush1.bf16.msra.mxu0 0
        %1220 = vmatprep.subr.bf16.mxu0 0
        %1221 = vmatpush1.bf16.msra.mxu0 0
        %1222 = vmatprep.subr.bf16.mxu0 0
        %1223 = vmatpush1.bf16.msra.mxu0 0
        %1224 = vmatprep.subr.bf16.mxu0 0
        %1225 = vmatpush1.bf16.msra.mxu0 0
        %1226 = vmatprep.subr.bf16.mxu0 0
        %1227 = vmatpush1.bf16.msra.mxu0 0
        %1228 = vmatprep.subr.bf16.mxu0 0
        %1229 = vmatpush1.bf16.msra.mxu0 0
        %1230 = vmatprep.subr.bf16.mxu0 0
        %1231 = vmatpush1.bf16.msra.mxu0 0
        %1232 = vmatprep.subr.bf16.mxu0 0
        %1233 = vmatpush1.bf16.msra.mxu0 0
        %1234 = vmatprep.subr.bf16.mxu0 0
        %1235 = vmatpush1.bf16.msra.mxu0 0
        %1236 = vmatprep.mubr.bf16.mxu0 0
        %1237 = vmatmul.mubr.bf16.gmra.mrb[0].mxu0 %v1199
        %v1238 = vpop.f32.mrb[0].mxu0
        %v1239 = vadd.f32 0.0, %v1238
        %v1240 = vpop.f32.mrb[0].mxu0
        %v1241 = vpop.f32.mrb[0].mxu0
        %v1242 = vadd.f32 0.0, %v1241
        %v1243 = vpop.f32.mrb[0].mxu0
        %1244 = vmatprep.mubr.bf16.mxu0 0
        %1245 = vmatmul.mubr.bf16.gmra.mrb[0].mxu0 %v1202
        %v1246 = vpop.f32.mrb[0].mxu0
        %v1247 = vadd.f32 0.0, %v1246
        %v1248 = vpop.f32.mrb[0].mxu0
        %v1249 = vpop.f32.mrb[0].mxu0
        %v1250 = vadd.f32 0.0, %v1249
        %v1251 = vpop.f32.mrb[0].mxu0
        %1252 = vdwg.mxu0
        %v1253 = vrcp.pop %v979
        %v1254 = vrcp.pop %v982
        %v1255 = vrcp.pop %v985
        %v1256 = vrcp.pop %v988
        %v1257 = vrcp.pop %v991
        %v1258 = vrcp.pop %v994
        %v1259 = vrcp.pop %v997
        %v1260 = vrcp.pop %v1000
        %v1261 = vrcp.pop %v1003
        %v1262 = vrcp.pop %v1006
        %v1263 = vrcp.pop %v1009
        %v1264 = vrcp.pop %v1012
        %v1265 = vrcp.pop %v1015
        %v1266 = vrcp.pop %v1018
        %v1267 = vrcp.pop %v1021
        %v1268 = vrcp.pop %v1024
        %v1269 = vmul.f32 %v1074, %v1253
        %v1270 = vmul.f32 %v1077, %v1254
        %v1271 = vmul.f32 %v1082, %v1255
        %v1272 = vmul.f32 %v1085, %v1256
        %v1273 = vmul.f32 %v1129, %v1257
        %v1274 = vmul.f32 %v1132, %v1258
        %v1275 = vmul.f32 %v1137, %v1259
        %v1276 = vmul.f32 %v1140, %v1260
        %v1277 = vmul.f32 %v1184, %v1261
        %v1278 = vmul.f32 %v1187, %v1262
        %v1279 = vmul.f32 %v1192, %v1263
        %v1280 = vmul.f32 %v1195, %v1264
        %v1281 = vmul.f32 %v1239, %v1265
        %v1282 = vmul.f32 %v1242, %v1266
        %v1283 = vmul.f32 %v1247, %v1267
        %v1284 = vmul.f32 %v1250, %v1268
        %v1285 = vpack.c.bf16 %v1270, %v1269
        %v1286 = vpack.c.bf16 %v1272, %v1271
        %v1287 = vpack.c.bf16 %v1274, %v1273
        %v1288 = vpack.c.bf16 %v1276, %v1275
        %v1289 = vpack.c.bf16 %v1278, %v1277
        %v1290 = vpack.c.bf16 %v1280, %v1279
        %v1291 = vpack.c.bf16 %v1282, %v1281
        %v1292 = vpack.c.bf16 %v1284, %v1283
        %v1293 = vld [vmem:[#allocation8] sm:$0xf]
        %v1294 = vld [vmem:[#allocation8 + $0x4] sm:$0xf]
        %v1295 = vld [vmem:[#allocation8 + $0x8] sm:$0xf]
        %v1296 = vld [vmem:[#allocation8 + $0xc] sm:$0xf]
        %v1297 = vld [vmem:[#allocation8 + $0x10] sm:$0xf]
        %v1298 = vld [vmem:[#allocation8 + $0x14] sm:$0xf]
        %v1299 = vld [vmem:[#allocation8 + $0x18] sm:$0xf]
        %v1300 = vld [vmem:[#allocation8 + $0x1c] sm:$0xf]
        %v1301 = vld [vmem:[#allocation8 + $0x20] sm:$0xf]
        %v1302 = vld [vmem:[#allocation8 + $0x24] sm:$0xf]
        %v1303 = vld [vmem:[#allocation8 + $0x28] sm:$0xf]
        %v1304 = vld [vmem:[#allocation8 + $0x2c] sm:$0xf]
        %v1305 = vld [vmem:[#allocation8 + $0x30] sm:$0xf]
        %v1306 = vld [vmem:[#allocation8 + $0x34] sm:$0xf]
        %v1307 = vld [vmem:[#allocation8 + $0x38] sm:$0xf]
        %v1308 = vld [vmem:[#allocation8 + $0x3c] sm:$0xf]
        %v1313 = vunpack.c.l.b16 %v1293
        %v1314 = vunpack.c.l.b16 %v1294
        %v1315 = vunpack.c.l.b16 %v1295
        %v1316 = vunpack.c.l.b16 %v1296
        %v1317 = vpack.c.b16 %v1314, %v1313
        %v1318 = vpack.c.b16 %v1316, %v1315
        %v1322 = vsel %vm636, %v1285, 0
        %v1325 = vsel %vm636, %v1286, 0
        %1327 = vmatprep.subr.bf16.mxu0 0
        %1328 = vmatpush1.bf16.msra.mxu0 %v1317
        %1329 = vmatprep.subr.bf16.mxu0 0
        %1330 = vmatpush1.bf16.msra.mxu0 %v1318
        %1331 = vmatprep.subr.bf16.mxu0 0
        %1332 = vmatpush1.bf16.msra.mxu0 0
        %1333 = vmatprep.subr.bf16.mxu0 0
        %1334 = vmatpush1.bf16.msra.mxu0 0
        %1335 = vmatprep.subr.bf16.mxu0 0
        %1336 = vmatpush1.bf16.msra.mxu0 0
        %1337 = vmatprep.subr.bf16.mxu0 0
        %1338 = vmatpush1.bf16.msra.mxu0 0
        %1339 = vmatprep.subr.bf16.mxu0 0
        %1340 = vmatpush1.bf16.msra.mxu0 0
        %1341 = vmatprep.subr.bf16.mxu0 0
        %1342 = vmatpush1.bf16.msra.mxu0 0
        %1343 = vmatprep.subr.bf16.mxu0 0
        %1344 = vmatpush1.bf16.msra.mxu0 0
        %1345 = vmatprep.subr.bf16.mxu0 0
        %1346 = vmatpush1.bf16.msra.mxu0 0
        %1347 = vmatprep.subr.bf16.mxu0 0
        %1348 = vmatpush1.bf16.msra.mxu0 0
        %1349 = vmatprep.subr.bf16.mxu0 0
        %1350 = vmatpush1.bf16.msra.mxu0 0
        %1351 = vmatprep.subr.bf16.mxu0 0
        %1352 = vmatpush1.bf16.msra.mxu0 0
        %1353 = vmatprep.subr.bf16.mxu0 0
        %1354 = vmatpush1.bf16.msra.mxu0 0
        %1355 = vmatprep.subr.bf16.mxu0 0
        %1356 = vmatpush1.bf16.msra.mxu0 0
        %1357 = vmatprep.subr.bf16.mxu0 0
        %1358 = vmatpush1.bf16.msra.mxu0 0
        %1359 = vmatprep.mubr.bf16.mxu0 0
        %1360 = vmatmul.mubr.bf16.gmra.mrb[0].mxu0 %v1322
        %v1361 = vpop.f32.mrb[0].mxu0
        %v1362 = vadd.f32 0.0, %v1361
        %v1363 = vpop.f32.mrb[0].mxu0
        %v1364 = vpop.f32.mrb[0].mxu0
        %v1365 = vadd.f32 0.0, %v1364
        %v1366 = vpop.f32.mrb[0].mxu0
        %1367 = vmatprep.mubr.bf16.mxu0 0
        %1368 = vmatmul.mubr.bf16.gmra.mrb[0].mxu0 %v1325
        %v1369 = vpop.f32.mrb[0].mxu0
        %v1370 = vadd.f32 0.0, %v1369
        %v1371 = vpop.f32.mrb[0].mxu0
        %v1372 = vpop.f32.mrb[0].mxu0
        %v1373 = vadd.f32 0.0, %v1372
        %v1374 = vpop.f32.mrb[0].mxu0
        %1375 = vdwg.mxu0
        %v1380 = vunpack.c.l.b16 %v1297
        %v1381 = vunpack.c.l.b16 %v1298
        %v1382 = vunpack.c.l.b16 %v1299
        %v1383 = vunpack.c.l.b16 %v1300
        %v1384 = vpack.c.b16 %v1381, %v1380
        %v1385 = vpack.c.b16 %v1383, %v1382
        %v1389 = vsel %vm636, %v1287, 0
        %v1392 = vsel %vm636, %v1288, 0
        %1394 = vmatprep.subr.bf16.mxu0 0
        %1395 = vmatpush1.bf16.msra.mxu0 %v1384
        %1396 = vmatprep.subr.bf16.mxu0 0
        %1397 = vmatpush1.bf16.msra.mxu0 %v1385
        %1398 = vmatprep.subr.bf16.mxu0 0
        %1399 = vmatpush1.bf16.msra.mxu0 0
        %1400 = vmatprep.subr.bf16.mxu0 0
        %1401 = vmatpush1.bf16.msra.mxu0 0
        %1402 = vmatprep.subr.bf16.mxu0 0
        %1403 = vmatpush1.bf16.msra.mxu0 0
        %1404 = vmatprep.subr.bf16.mxu0 0
        %1405 = vmatpush1.bf16.msra.mxu0 0
        %1406 = vmatprep.subr.bf16.mxu0 0
        %1407 = vmatpush1.bf16.msra.mxu0 0
        %1408 = vmatprep.subr.bf16.mxu0 0
        %1409 = vmatpush1.bf16.msra.mxu0 0
        %1410 = vmatprep.subr.bf16.mxu0 0
        %1411 = vmatpush1.bf16.msra.mxu0 0
        %1412 = vmatprep.subr.bf16.mxu0 0
        %1413 = vmatpush1.bf16.msra.mxu0 0
        %1414 = vmatprep.subr.bf16.mxu0 0
        %1415 = vmatpush1.bf16.msra.mxu0 0
        %1416 = vmatprep.subr.bf16.mxu0 0
        %1417 = vmatpush1.bf16.msra.mxu0 0
        %1418 = vmatprep.subr.bf16.mxu0 0
        %1419 = vmatpush1.bf16.msra.mxu0 0
        %1420 = vmatprep.subr.bf16.mxu0 0
        %1421 = vmatpush1.bf16.msra.mxu0 0
        %1422 = vmatprep.subr.bf16.mxu0 0
        %1423 = vmatpush1.bf16.msra.mxu0 0
        %1424 = vmatprep.subr.bf16.mxu0 0
        %1425 = vmatpush1.bf16.msra.mxu0 0
        %1426 = vmatprep.mubr.bf16.mxu0 0
        %1427 = vmatmul.mubr.bf16.gmra.mrb[0].mxu0 %v1389
        %v1428 = vpop.f32.mrb[0].mxu0
        %v1429 = vadd.f32 0.0, %v1428
        %v1430 = vpop.f32.mrb[0].mxu0
        %v1431 = vpop.f32.mrb[0].mxu0
        %v1432 = vadd.f32 0.0, %v1431
        %v1433 = vpop.f32.mrb[0].mxu0
        %1434 = vmatprep.mubr.bf16.mxu0 0
        %1435 = vmatmul.mubr.bf16.gmra.mrb[0].mxu0 %v1392
        %v1436 = vpop.f32.mrb[0].mxu0
        %v1437 = vadd.f32 0.0, %v1436
        %v1438 = vpop.f32.mrb[0].mxu0
        %v1439 = vpop.f32.mrb[0].mxu0
        %v1440 = vadd.f32 0.0, %v1439
        %v1441 = vpop.f32.mrb[0].mxu0
        %1442 = vdwg.mxu0
        %v1447 = vunpack.c.l.b16 %v1301
        %v1448 = vunpack.c.l.b16 %v1302
        %v1449 = vunpack.c.l.b16 %v1303
        %v1450 = vunpack.c.l.b16 %v1304
        %v1451 = vpack.c.b16 %v1448, %v1447
        %v1452 = vpack.c.b16 %v1450, %v1449
        %v1456 = vsel %vm636, %v1289, 0
        %v1459 = vsel %vm636, %v1290, 0
        %1461 = vmatprep.subr.bf16.mxu0 0
        %1462 = vmatpush1.bf16.msra.mxu0 %v1451
        %1463 = vmatprep.subr.bf16.mxu0 0
        %1464 = vmatpush1.bf16.msra.mxu0 %v1452
        %1465 = vmatprep.subr.bf16.mxu0 0
        %1466 = vmatpush1.bf16.msra.mxu0 0
        %1467 = vmatprep.subr.bf16.mxu0 0
        %1468 = vmatpush1.bf16.msra.mxu0 0
        %1469 = vmatprep.subr.bf16.mxu0 0
        %1470 = vmatpush1.bf16.msra.mxu0 0
        %1471 = vmatprep.subr.bf16.mxu0 0
        %1472 = vmatpush1.bf16.msra.mxu0 0
        %1473 = vmatprep.subr.bf16.mxu0 0
        %1474 = vmatpush1.bf16.msra.mxu0 0
        %1475 = vmatprep.subr.bf16.mxu0 0
        %1476 = vmatpush1.bf16.msra.mxu0 0
        %1477 = vmatprep.subr.bf16.mxu0 0
        %1478 = vmatpush1.bf16.msra.mxu0 0
        %1479 = vmatprep.subr.bf16.mxu0 0
        %1480 = vmatpush1.bf16.msra.mxu0 0
        %1481 = vmatprep.subr.bf16.mxu0 0
        %1482 = vmatpush1.bf16.msra.mxu0 0
        %1483 = vmatprep.subr.bf16.mxu0 0
        %1484 = vmatpush1.bf16.msra.mxu0 0
        %1485 = vmatprep.subr.bf16.mxu0 0
        %1486 = vmatpush1.bf16.msra.mxu0 0
        %1487 = vmatprep.subr.bf16.mxu0 0
        %1488 = vmatpush1.bf16.msra.mxu0 0
        %1489 = vmatprep.subr.bf16.mxu0 0
        %1490 = vmatpush1.bf16.msra.mxu0 0
        %1491 = vmatprep.subr.bf16.mxu0 0
        %1492 = vmatpush1.bf16.msra.mxu0 0
        %1493 = vmatprep.mubr.bf16.mxu0 0
        %1494 = vmatmul.mubr.bf16.gmra.mrb[0].mxu0 %v1456
        %v1495 = vpop.f32.mrb[0].mxu0
        %v1496 = vadd.f32 0.0, %v1495
        %v1497 = vpop.f32.mrb[0].mxu0
        %v1498 = vpop.f32.mrb[0].mxu0
        %v1499 = vadd.f32 0.0, %v1498
        %v1500 = vpop.f32.mrb[0].mxu0
        %1501 = vmatprep.mubr.bf16.mxu0 0
        %1502 = vmatmul.mubr.bf16.gmra.mrb[0].mxu0 %v1459
        %v1503 = vpop.f32.mrb[0].mxu0
        %v1504 = vadd.f32 0.0, %v1503
        %v1505 = vpop.f32.mrb[0].mxu0
        %v1506 = vpop.f32.mrb[0].mxu0
        %v1507 = vadd.f32 0.0, %v1506
        %v1508 = vpop.f32.mrb[0].mxu0
        %1509 = vdwg.mxu0
        %v1514 = vunpack.c.l.b16 %v1305
        %v1515 = vunpack.c.l.b16 %v1306
        %v1516 = vunpack.c.l.b16 %v1307
        %v1517 = vunpack.c.l.b16 %v1308
        %v1518 = vpack.c.b16 %v1515, %v1514
        %v1519 = vpack.c.b16 %v1517, %v1516
        %v1523 = vsel %vm636, %v1291, 0
        %v1526 = vsel %vm636, %v1292, 0
        %1528 = vmatprep.subr.bf16.mxu0 0
        %1529 = vmatpush1.bf16.msra.mxu0 %v1518
        %1530 = vmatprep.subr.bf16.mxu0 0
        %1531 = vmatpush1.bf16.msra.mxu0 %v1519
        %1532 = vmatprep.subr.bf16.mxu0 0
        %1533 = vmatpush1.bf16.msra.mxu0 0
        %1534 = vmatprep.subr.bf16.mxu0 0
        %1535 = vmatpush1.bf16.msra.mxu0 0
        %1536 = vmatprep.subr.bf16.mxu0 0
        %1537 = vmatpush1.bf16.msra.mxu0 0
        %1538 = vmatprep.subr.bf16.mxu0 0
        %1539 = vmatpush1.bf16.msra.mxu0 0
        %1540 = vmatprep.subr.bf16.mxu0 0
        %1541 = vmatpush1.bf16.msra.mxu0 0
        %1542 = vmatprep.subr.bf16.mxu0 0
        %1543 = vmatpush1.bf16.msra.mxu0 0
        %1544 = vmatprep.subr.bf16.mxu0 0
        %1545 = vmatpush1.bf16.msra.mxu0 0
        %1546 = vmatprep.subr.bf16.mxu0 0
        %1547 = vmatpush1.bf16.msra.mxu0 0
        %1548 = vmatprep.subr.bf16.mxu0 0
        %1549 = vmatpush1.bf16.msra.mxu0 0
        %1550 = vmatprep.subr.bf16.mxu0 0
        %1551 = vmatpush1.bf16.msra.mxu0 0
        %1552 = vmatprep.subr.bf16.mxu0 0
        %1553 = vmatpush1.bf16.msra.mxu0 0
        %1554 = vmatprep.subr.bf16.mxu0 0
        %1555 = vmatpush1.bf16.msra.mxu0 0
        %1556 = vmatprep.subr.bf16.mxu0 0
        %1557 = vmatpush1.bf16.msra.mxu0 0
        %1558 = vmatprep.subr.bf16.mxu0 0
        %1559 = vmatpush1.bf16.msra.mxu0 0
        %1560 = vmatprep.mubr.bf16.mxu0 0
        %1561 = vmatmul.mubr.bf16.gmra.mrb[0].mxu0 %v1523
        %v1562 = vpop.f32.mrb[0].mxu0
        %v1563 = vadd.f32 0.0, %v1562
        %v1564 = vpop.f32.mrb[0].mxu0
        %v1565 = vpop.f32.mrb[0].mxu0
        %v1566 = vadd.f32 0.0, %v1565
        %v1567 = vpop.f32.mrb[0].mxu0
        %1568 = vmatprep.mubr.bf16.mxu0 0
        %1569 = vmatmul.mubr.bf16.gmra.mrb[0].mxu0 %v1526
        %v1570 = vpop.f32.mrb[0].mxu0
        %v1571 = vadd.f32 0.0, %v1570
        %v1572 = vpop.f32.mrb[0].mxu0
        %v1573 = vpop.f32.mrb[0].mxu0
        %v1574 = vadd.f32 0.0, %v1573
        %v1575 = vpop.f32.mrb[0].mxu0
        %1576 = vdwg.mxu0
        %v1577 = vadd.f32 %v1362, %v1429
        %v1578 = vadd.f32 %v1577, %v1496
        %v1579 = vadd.f32 %v1578, %v1563
        %v1580 = vadd.f32 %v1365, %v1432
        %v1581 = vadd.f32 %v1580, %v1499
        %v1582 = vadd.f32 %v1581, %v1566
        %v1583 = vadd.f32 %v1370, %v1437
        %v1584 = vadd.f32 %v1583, %v1504
        %v1585 = vadd.f32 %v1584, %v1571
        %v1586 = vadd.f32 %v1373, %v1440
        %v1587 = vadd.f32 %v1586, %v1507
        %v1588 = vadd.f32 %v1587, %v1574
        %v1589 = vadd.f32 %v314, %v1579
        %v1590 = vadd.f32 %v315, %v1582
        %v1591 = vadd.f32 %v316, %v1585
        %v1592 = vadd.f32 %v317, %v1588
        %1593 = vadd.xlane.f32.xlu0 %v1589
        %v1594 = vpop.xlane.xlu0 %1593
        %1595 = vadd.xlane.f32.xlu0 %v1590
        %v1596 = vpop.xlane.xlu0 %1595
        %1597 = vadd.xlane.f32.xlu0 %v1591
        %v1598 = vpop.xlane.xlu0 %1597
        %1599 = vadd.xlane.f32.xlu0 %v1592
        %v1600 = vpop.xlane.xlu0 %1599
        %v1601 = vmul.f32 %v1594, 0.0078125
        %v1602 = vmul.f32 %v1596, 0.0078125
        %v1603 = vmul.f32 %v1598, 0.0078125
        %v1604 = vmul.f32 %v1600, 0.0078125
        %v1605 = vmul.f32 %v1589, %v1589
        %v1606 = vmul.f32 %v1590, %v1590
        %v1607 = vmul.f32 %v1591, %v1591
        %v1608 = vmul.f32 %v1592, %v1592
        %1609 = vadd.xlane.f32.xlu0 %v1605
        %v1610 = vpop.xlane.xlu0 %1609
        %1611 = vadd.xlane.f32.xlu0 %v1606
        %v1612 = vpop.xlane.xlu0 %1611
        %1613 = vadd.xlane.f32.xlu0 %v1607
        %v1614 = vpop.xlane.xlu0 %1613
        %1615 = vadd.xlane.f32.xlu0 %v1608
        %v1616 = vpop.xlane.xlu0 %1615
        %v1617 = vmul.f32 %v1610, 0.0078125
        %v1618 = vmul.f32 %v1612, 0.0078125
        %v1619 = vmul.f32 %v1614, 0.0078125
        %v1620 = vmul.f32 %v1616, 0.0078125
        %v1621 = vmul.f32 %v1601, %v1601
        %v1622 = vmul.f32 %v1602, %v1602
        %v1623 = vmul.f32 %v1603, %v1603
        %v1624 = vmul.f32 %v1604, %v1604
        %v1625 = vsub.f32 %v1617, %v1621
        %v1626 = vsub.f32 %v1618, %v1622
        %v1627 = vsub.f32 %v1619, %v1623
        %v1628 = vsub.f32 %v1620, %v1624
        %v1629 = vsub.f32 %v1589, %v1601
        %v1630 = vsub.f32 %v1590, %v1602
        %v1631 = vsub.f32 %v1591, %v1603
        %v1632 = vsub.f32 %v1592, %v1604
        %v1633 = vadd.f32 %v1625, 1e-05
        %v1634 = vadd.f32 %v1626, 1e-05
        %v1635 = vadd.f32 %v1627, 1e-05
        %v1636 = vadd.f32 %v1628, 1e-05
        %v1637 = vrsqrt.pop %v1633
        %v1638 = vrsqrt.pop %v1634
        %v1639 = vrsqrt.pop %v1635
        %v1640 = vrsqrt.pop %v1636
        %v1641 = vmul.f32 %v1629, %v1637
        %v1642 = vmul.f32 %v1630, %v1638
        %v1643 = vmul.f32 %v1631, %v1639
        %v1644 = vmul.f32 %v1632, %v1640
        %v1645 = vld [vmem:[%s4] sm:$0x1]
        %v1647 = vlaneseq
        %v1648 = vshrl.u32 %v1647, 7
        %v1649 = vsub.s32 0, %v1648
        %v1650 = vrot.slane %v1645, %v1649
        %v1652 = vmul.f32 %v1641, %v1650
        %v1653 = vmul.f32 %v1642, %v1650
        %v1654 = vmul.f32 %v1643, %v1650
        %v1655 = vmul.f32 %v1644, %v1650
        %v1656 = vld [vmem:[%s5] sm:$0x1]
        %v1658 = vlaneseq
        %v1659 = vshrl.u32 %v1658, 7
        %v1660 = vsub.s32 0, %v1659
        %v1661 = vrot.slane %v1656, %v1660
        %v1663 = vadd.f32 %v1652, %v1661
        %v1664 = vadd.f32 %v1653, %v1661
        %v1665 = vadd.f32 %v1654, %v1661
        %v1666 = vadd.f32 %v1655, %v1661
        %1667 = vst [vmem:[%s312] sm:$0xff] %v1663
        %1668 = vst [vmem:[%s312 + $0x8] sm:$0xff] %v1664
        %1669 = vst [vmem:[%s312 + $0x10] sm:$0xff] %v1665
        %1670 = vst [vmem:[%s312 + $0x18] sm:$0xff] %v1666
        %s1671 = sand.u32 %s164, 1
        %s1672 = scalar_lea.sflag [#allocation4], %s1671
        %s1673 = sand.u32 %s164, 1
        %s1674 = smul.addr %s1673, 32
        %s1675 = scalar_lea.vmem [#allocation10], %s1674
        // Predicated region
        $region61: #{tpu_custom_call.1} parent=43 // pred_check
          %p1676 = pneg %p174
        $region62: #{tpu_custom_call.1} parent=43 // pred_check_branch
          %1678 = sbr.rel (%p1676) target = $region64
        $region63: #{tpu_custom_call.1} parent=43 // pred_region
          %s1680 = ssub.s32 512, 512
          %1681 = vsyncadd %s1672, %s1680
          %s1682 = smul.addr %s25, 128
          %s1683 = scalar_lea.hbm %s6, %s1682
          %s1684 = sshll.u32 %s1675, 4
          %s1685 = int_to_ptr.vmem [resolvable:$true] %s1684
          %1690 = dma.vmem_to_hbm [thread:$0]  %s1685, 512, %s1683, %s1672, 128, 256, 8
        $region64: #{tpu_custom_call.1} parent=43 // pred_fallthru
          _
      $region44: #{tpu_custom_call.1} parent=5 // pred_fallthru
        _
      %p1691 = scmp.le.s32.totalorder 2, %s20
      // Predicated region
      $region65: #{tpu_custom_call.1} parent=5 // pred_check
        %p1692 = pneg %p1691
      $region66: #{tpu_custom_call.1} parent=5 // pred_check_branch
        %1694 = sbr.rel (%p1692) target = $region68
      $region67: #{tpu_custom_call.1} parent=5 // pred_region
        %s1695 = ssub.s32 %s20, 2
        // Predicated region
        $region69: #{tpu_custom_call.1} parent=67 // pred_check
          %p1696 = pneg %p180
        $region70: #{tpu_custom_call.1} parent=67 // pred_check_branch
          %1698 = sbr.rel (%p1696) target = $region72
        $region71: #{tpu_custom_call.1} parent=67 // pred_region
          %s1699 = sand.u32 %s165, 1
          %s1700 = scalar_lea.sflag [#allocation4], %s1699
          %s1701 = sand.u32 %s165, 1
          %s1702 = smul.addr %s1701, 32
          %s1703 = scalar_lea.vmem [#allocation10], %s1702
          %1704 = dma.done %s1700, 512
        $region72: #{tpu_custom_call.1} parent=67 // pred_fallthru
          _
      $region68: #{tpu_custom_call.1} parent=5 // pred_fallthru
        _
    $region6: #{tpu_custom_call.1} parent=1 // loop_footer
      %s24 = sadd.s32 1, %s20
    $region7: #{tpu_custom_call.1} parent=1 // loop_footer_branch
      %19 = sbr.rel target = $region3
    $region8: #{tpu_custom_call.1} parent=1 // loop_exit
      _
    %1705 = vsyncpa [#allocation3], 1
    %s1706 = scalar_lea.sflag [#allocation3], 1
    %1707 = vsyncpa %s1706, 1
    %1708 = vsyncpa [#allocation6], 1
    %1709 = vsyncpa [#allocation9], 1
    %1710 = vsyncpa [#allocation4], 1
    %s1711 = scalar_lea.sflag [#allocation4], 1
    %1712 = vsyncpa %s1711, 1

</llo_original>
